<compile_context>
chip_gen: v7x
topology: tpu7x:2x2x1
jax: 0.10.0
libtpu: 0.0.40
codegen_flags: <defaults>
</compile_context>

<pallas_src>
import numpy as np
import jax
import jax.numpy as jnp
from jax import lax
from jax.experimental import pallas as pl
from jax.experimental.pallas import tpu as pltpu


_LANES = 512            # lane-dense width for the objectness kernel (multiple of 128)
_MAX_BLOCK_ROWS = 1024  # 1024x512xf32 = 2 MiB / block; double-buffered = 4 MiB VMEM
_PAD_LOGIT = -1.0e4     # softplus(_PAD_LOGIT) == 0 exactly in f32


def _round_up(v, m):
    return ((v + m - 1) // m) * m


def _cdiv(a, b):
    return -(-a // b)


# -----------------------------------------------------------------------------
# Kernel 1: objectness BCE against an implicit all-zero target == softplus sum.
# Single input stream, tiled over a "parallel" grid, each block writes its
# partial sum into its own (8, 128) tile (unmasked store).  Padding must be
# _PAD_LOGIT so it contributes exactly zero.
# -----------------------------------------------------------------------------
def objectness_softplus_partials(logits_2d, block_rows):
    rows, lanes = logits_2d.shape
    n_blocks = rows // block_rows

    def kernel(x_ref, o_ref):
        x = x_ref[...].astype(jnp.float32)
        s = jnp.sum(jnp.maximum(x, 0.0) + jnp.log1p(jnp.exp(-jnp.abs(x))))
        o_ref[...] = jnp.zeros((1, 8, 128), jnp.float32) + s

    partials = pl.pallas_call(
        kernel,
        grid=(n_blocks,),
        out_shape=jax.ShapeDtypeStruct((n_blocks, 8, 128), jnp.float32),
        in_specs=[pl.BlockSpec((block_rows, lanes), lambda i: (i, 0))],
        out_specs=pl.BlockSpec((1, 8, 128), lambda i: (i, 0, 0)),
        compiler_params=pltpu.CompilerParams(
            dimension_semantics=("parallel",)),
    )(logits_2d)
    return partials[:, 0, 0]


# -----------------------------------------------------------------------------
# Kernel 2: fused per-match losses for ALL layers in one launch, lane-dense
# along the match axis.  Per layer it emits 4 scalars into SMEM:
#   [ sum (1-giou)*valid,  sum cls BCE * valid,  sum valid,
#     sum x_obj * clamp(giou, 0) * winner ]   (the softplus-BCE correction).
# -----------------------------------------------------------------------------
def fused_match_sums(pred_t, aux, num_classes):
    """pred_t: (L, 5+nc, Mp) matched-cell predictions; aux: (L, 9, Mp) rows =
    [anchor_w, anchor_h, gt_cx, gt_cy, gt_w, gt_h, class_id, valid, winner]."""
    L, K, Mp = pred_t.shape
    nc = num_classes

    def kernel(pred_ref, aux_ref, sums_ref):
        l = pl.program_id(0)
        pred = pred_ref[...].astype(jnp.float32)    # (5+nc, Mp)
        a = aux_ref[...]                            # (9, Mp)
        anc_w, anc_h = a[0:1], a[1:2]
        g_cx, g_cy, g_w, g_h = a[2:3], a[3:4], a[4:5], a[5:6]
        cls_f, valid, winner = a[6:7], a[7:8], a[8:9]

        # box decode (lane axis = matches, fully VPU-parallel)
        p_cx = jax.nn.sigmoid(pred[0:1]) * 2.0 - 0.5
        p_cy = jax.nn.sigmoid(pred[1:2]) * 2.0 - 0.5
        p_w = jnp.square(jax.nn.sigmoid(pred[2:3]) * 2.0) * anc_w
        p_h = jnp.square(jax.nn.sigmoid(pred[3:4]) * 2.0) * anc_h
        obj_logit = pred[4:5]

        a_xmin, a_xmax = p_cx - p_w * 0.5, p_cx + p_w * 0.5
        a_ymin, a_ymax = p_cy - p_h * 0.5, p_cy + p_h * 0.5
        g_xmin, g_xmax = g_cx - g_w * 0.5, g_cx + g_w * 0.5
        g_ymin, g_ymax = g_cy - g_h * 0.5, g_cy + g_h * 0.5

        iw = jnp.maximum(jnp.minimum(a_xmax, g_xmax) - jnp.maximum(a_xmin, g_xmin), 0.0)
        ih = jnp.maximum(jnp.minimum(a_ymax, g_ymax) - jnp.maximum(a_ymin, g_ymin), 0.0)
        inter = iw * ih
        union = ((a_xmax - a_xmin) * (a_ymax - a_ymin)
                 + (g_xmax - g_xmin) * (g_ymax - g_ymin) - inter)
        iou = inter / union  # exact reference formula: no eps on union
        cw = jnp.maximum(a_xmax, g_xmax) - jnp.minimum(a_xmin, g_xmin) + 1e-16
        ch = jnp.maximum(a_ymax, g_ymax) - jnp.minimum(a_ymin, g_ymin)
        carea = cw * ch + 1e-16
        giou = iou - (carea - union) / carea        # (1, Mp)

        box_sum = jnp.sum(jnp.where(valid > 0.0, 1.0 - giou, 0.0))
        count = jnp.sum(valid)
        # softplus decomposition: BCE(x, z) = softplus(x) - x*z, so matched cells
        # only need -x_obj * clamp(giou, 0) on top of the full-map softplus sum.
        obj_corr = jnp.sum(jnp.where(winner > 0.0,
                                     obj_logit * jnp.maximum(giou, 0.0), 0.0))

        if nc > 1:
            cls_logits = pred[5:]                   # (nc, Mp)
            one_hot = (lax.broadcasted_iota(jnp.int32, (nc, Mp), 0)
                       == cls_f.astype(jnp.int32)).astype(jnp.float32)
            bce = (jnp.maximum(cls_logits, 0.0) - cls_logits * one_hot
                   + jnp.log1p(jnp.exp(-jnp.abs(cls_logits))))
            cls_sum = jnp.sum(jnp.where(valid > 0.0, bce, 0.0))
        else:
            cls_sum = jnp.float32(0.0)

        sums_ref[l, 0] = box_sum
        sums_ref[l, 1] = cls_sum
        sums_ref[l, 2] = count
        sums_ref[l, 3] = obj_corr

    return pl.pallas_call(
        kernel,
        grid=(L,),
        out_shape=jax.ShapeDtypeStruct((L, 4), jnp.float32),
        in_specs=[pl.BlockSpec((None, K, Mp), lambda l: (l, 0, 0)),
                  pl.BlockSpec((None, 9, Mp), lambda l: (l, 0, 0))],
        out_specs=pl.BlockSpec(memory_space=pltpu.MemorySpace.SMEM),
        compiler_params=pltpu.CompilerParams(
            dimension_semantics=("arbitrary",)),
    )(pred_t, aux)


# -----------------------------------------------------------------------------
# YoloLoss forward (glue in JAX, hot paths in the two Pallas kernels above)
# -----------------------------------------------------------------------------
def yolo_loss_forward(predict, targets, anchors, num_classes):
    """predict: tuple of NCHW arrays (B, 3*(5+nc), H_i, W_i);
    targets: (T, 6) rows = [image_id, class_id, cx, cy, w, h] (normalized 0..1);
    anchors: (num_layers, 3, 2) already divided by the per-layer stride."""
    num_layers = len(predict)
    balance = [4.0, 1.0, 0.4]
    gap_threshold = 4.0
    batch_size = predict[0].shape[0]
    num_target = targets.shape[0]
    nc = num_classes

    group_offsets = jnp.array([[0.0, 0.0], [0.5, 0.0], [0.0, 0.5],
                               [-0.5, 0.0], [0.0, -0.5]], jnp.float32)

    # one lane-dense block size shared by all layers -> one consolidated call;
    # >= 2 blocks for the largest layer (keeps both v7x TCs busy), <= 2 MiB/block.
    rows_per_layer = [_cdiv(p.shape[0] * 3 * p.shape[2] * p.shape[3], _LANES)
                      for p in predict]
    block_rows = min(_MAX_BLOCK_ROWS,
                     max(8, _round_up(_cdiv(max(rows_per_layer), 2), 8)))
    block_elems = block_rows * _LANES

    M = 5 * 3 * num_target
    Mp = _round_up(max(M, 1), 128)

    obj_parts = []          # per-layer padded flat objectness logits
    layer_blocks = []       # per-layer (n_cells, n_blocks)
    pred_parts, aux_parts = [], []

    for ilayer in range(num_layers):
        layer_raw = predict[ilayer]
        B, _, H, W = layer_raw.shape
        layer5 = layer_raw.reshape(B, 3, 5 + nc, H, W)        # no NCHW->NHWC copy
        layer_anchors = anchors[ilayer].astype(jnp.float32)   # (3, 2)
        num_anchor = layer_anchors.shape[0]

        n_cells = B * num_anchor * H * W
        n_blocks = _cdiv(_cdiv(n_cells, _LANES), block_rows)
        layer_blocks.append((n_cells, n_blocks))

        # objectness logits, flattened & padded with a large negative constant
        # so softplus(pad) == 0 exactly (no in-kernel tail mask needed).
        # TODO(synk): the strided NCHW channel slice + pad stays XLA glue.
        obj_flat = layer5[:, :, 4, :, :].reshape(-1)
        obj_parts.append(jnp.pad(obj_flat, (0, n_blocks * block_elems - n_cells),
                                 constant_values=_PAD_LOGIT))

        if num_target == 0:
            continue

        # -------- anchor/target matching (data-dependent XLA glue) --------
        gain = jnp.array([1.0, 1.0, W, H, W, H], jnp.float32)
        t = targets.astype(jnp.float32) * gain                 # (T, 6)
        r = t[None, :, 4:6] / layer_anchors[:, None, :]        # (3, T, 2)
        max_ratio = jnp.max(jnp.maximum(r, 1.0 / r), axis=2)   # (3, T)
        select_mask = (max_ratio < gap_threshold).reshape(-1)  # (3T,)

        flat_t = jnp.broadcast_to(t[None], (num_anchor, num_target, 6)).reshape(-1, 6)
        flat_a = jnp.broadcast_to(jnp.arange(num_anchor, dtype=jnp.int32)[:, None],
                                  (num_anchor, num_target)).reshape(-1)

        xy = flat_t[:, 2:4]
        rem = xy % 1.0
        less = (rem < 0.5) & (xy > 1.0)
        greater = (rem > 0.5) & (xy < jnp.array([W - 1.0, H - 1.0], jnp.float32))
        group_masks = jnp.stack([jnp.ones_like(select_mask),
                                 less[:, 0], less[:, 1],
                                 greater[:, 0], greater[:, 1]],
                                axis=0) & select_mask[None]    # (5, 3T)

        ex_valid = group_masks.reshape(M)
        ex_t = jnp.broadcast_to(flat_t[None], (5, num_anchor * num_target, 6)).reshape(M, 6)
        ex_a = jnp.broadcast_to(flat_a[None], (5, num_anchor * num_target)).reshape(M)
        ex_off = jnp.broadcast_to(group_offsets[:, None, :],
                                  (5, num_anchor * num_target, 2)).reshape(M, 2)

        gt_cls = ex_t[:, 1].astype(jnp.int32)
        gt_xy = ex_t[:, 2:4]
        gt_wh = ex_t[:, 4:6]
        grid_xy = jnp.floor(gt_xy - ex_off)
        gt_xy_cell = gt_xy - grid_xy
        grid_x = jnp.clip(grid_xy[:, 0].astype(jnp.int32), 0, W - 1)
        grid_y = jnp.clip(grid_xy[:, 1].astype(jnp.int32), 0, H - 1)
        img_idx = jnp.clip(ex_t[:, 0].astype(jnp.int32), 0, B - 1)

        sel_anchors = layer_anchors[ex_a]                      # (M, 2)
        # TODO(synk): data-dependent gather of matched predictions stays in XLA.
        pred_at = layer5[img_idx, ex_a, :, grid_y, grid_x]     # (M, 5+nc)

        # duplicate matched cells: deterministic "last valid duplicate wins"
        # (matches CPU-PyTorch scatter order); O(M^2) bool compare, M = 15*T.
        flat_idx = ((img_idx * num_anchor + ex_a) * H + grid_y) * W + grid_x
        ar = jnp.arange(M)
        dup_later = jnp.any((flat_idx[None, :] == flat_idx[:, None])
                            & ex_valid[None, :] & (ar[None, :] > ar[:, None]), axis=1)
        winner = ex_valid & jnp.logical_not(dup_later)

        aux = jnp.stack([sel_anchors[:, 0], sel_anchors[:, 1],
                         gt_xy_cell[:, 0], gt_xy_cell[:, 1],
                         gt_wh[:, 0], gt_wh[:, 1],
                         gt_cls.astype(jnp.float32),
                         ex_valid.astype(jnp.float32),
                         winner.astype(jnp.float32)], axis=0)  # (9, M)

        pred_parts.append(jnp.pad(jnp.transpose(pred_at), ((0, 0), (0, Mp - M))))
        aux_parts.append(jnp.pad(aux, ((0, 0), (0, Mp - M))))

    # ---- one fused per-match Pallas kernel across all layers ----
    if num_target > 0:
        sums = fused_match_sums(jnp.stack(pred_parts, axis=0),
                                jnp.stack(aux_parts, axis=0), nc)   # (L, 4)

    # ---- one consolidated objectness softplus Pallas kernel across layers ----
    obj_2d = jnp.concatenate(obj_parts).reshape(-1, _LANES)
    partial = objectness_softplus_partials(obj_2d, block_rows)      # (total_blocks,)

    loss_cls = jnp.float32(0.0)
    loss_box = jnp.float32(0.0)
    loss_obj = jnp.float32(0.0)
    blk_off = 0
    for ilayer in range(num_layers):
        n_cells, n_blocks = layer_blocks[ilayer]
        softplus_sum = jnp.sum(partial[blk_off:blk_off + n_blocks])
        blk_off += n_blocks
        obj_corr = sums[ilayer, 3] if num_target > 0 else jnp.float32(0.0)
        loss_obj = loss_obj + (softplus_sum - obj_corr) / n_cells * balance[ilayer]
        if num_target > 0:
            count = sums[ilayer, 2]
            has_match = count > 0
            loss_box = loss_box + jnp.where(
                has_match, sums[ilayer, 0] / jnp.maximum(count, 1.0), 0.0)
            if nc > 1:
                loss_cls = loss_cls + jnp.where(
                    has_match, sums[ilayer, 1] / jnp.maximum(count * nc, 1.0), 0.0)

    num_predict = num_layers
    scale = 3.0 / num_predict
    loss_box = loss_box * (0.05 * scale)
    loss_obj = loss_obj * (1.0 * scale * (1.4 if num_predict == 4 else 1.0))
    loss_cls = loss_cls * (0.5 * num_classes / 80.0 * scale)
    loss = loss_box + loss_obj + loss_cls
    return loss * batch_size, loss_box, loss_obj, loss_cls


# -----------------------------------------------------------------------------
# Example run
# -----------------------------------------------------------------------------
if __name__ == "__main__":
    key = jax.random.PRNGKey(0)
    B, nc, T = 2, 4, 8
    strides = np.array([8.0, 16.0, 32.0], np.float32)

    # deterministic "model_info" anchors (YOLOv5 defaults), normalized by stride
    anchors_raw = np.array([[10, 13, 16, 30, 33, 23],
                            [30, 61, 62, 45, 59, 119],
                            [116, 90, 156, 198, 373, 326]], np.float32)
    anchors = jnp.asarray(anchors_raw.reshape(3, 3, 2) / strides.reshape(3, 1, 1))

    img_size = 128
    shapes = [(B, 3 * (5 + nc), int(img_size // s), int(img_size // s)) for s in strides]
    keys = jax.random.split(key, 6)
    predict = tuple(0.5 * jax.random.normal(keys[i], shp, jnp.float32)
                    for i, shp in enumerate(shapes))

    img_id = jnp.tile(jnp.arange(B, dtype=jnp.float32), (T // B + 1,))[:T]
    cls_id = jax.random.randint(keys[3], (T,), 0, nc).astype(jnp.float32)
    xy = jax.random.uniform(keys[4], (T, 2), minval=0.1, maxval=0.9)
    wh = jax.random.uniform(keys[5], (T, 2), minval=0.05, maxval=0.4)
    targets = jnp.concatenate([img_id[:, None], cls_id[:, None], xy, wh], axis=1)

    loss_fn = jax.jit(yolo_loss_forward, static_argnames=("num_classes",))
    loss, lbox, lobj, lcls = loss_fn(predict, targets, anchors, num_classes=nc)
    jax.block_until_ready(loss)

    loss_visual = (f"Loss: {float(loss) / B:.06f}, Box: {float(lbox):.06f}, "
                   f"Obj: {float(lobj):.06f}, Cls: {float(lcls):.06f}")
    print(loss_visual)
    print("KERNEL_OK")
</pallas_src>

<mosaic_0001>
module attributes {stable_mosaic.version = 11 : i64} {
  func.func @kernel(%arg0: i32, %arg1: memref<8x512xf32, #tpu.memory_space<vmem>>, %arg2: memref<1x8x128xf32, #tpu.memory_space<vmem>>) attributes {dimension_semantics = [#tpu.dimension_semantics<parallel>], iteration_bounds = array<i64: 3>, scalar_prefetch = 0 : i64, scratch_operands = 0 : i64, tpu.core_type = #tpu.core_type<tc>, window_params = [{transform_indices = @transform_0, window_bounds = array<i64: 8, 512>}, {transform_indices = @transform_1, window_bounds = array<i64: 1, 8, 128>}]} {
    %c0 = arith.constant 0 : index
    %c0_0 = arith.constant 0 : index
    %0 = vector.load %arg1[%c0, %c0_0] : memref<8x512xf32, #tpu.memory_space<vmem>>, vector<8x512xf32>
    %cst = arith.constant 0.000000e+00 : f32
    %1 = vector.broadcast %cst : f32 to vector<8x512xf32>
    %2 = arith.maximumf %0, %1 : vector<8x512xf32>
    %3 = math.absf %0 : vector<8x512xf32>
    %cst_1 = arith.constant 0.000000e+00 : f32
    %4 = vector.broadcast %cst_1 : f32 to vector<8x512xf32>
    %5 = arith.subf %4, %3 : vector<8x512xf32>
    %6 = math.exp %5 : vector<8x512xf32>
    %7 = math.log1p %6 : vector<8x512xf32>
    %8 = arith.addf %2, %7 : vector<8x512xf32>
    %9 = vector.shape_cast %8 : vector<8x512xf32> to vector<1x8x512xf32>
    %cst_2 = arith.constant dense<0.000000e+00> : vector<1xf32>
    %10 = vector.multi_reduction <add>, %9, %cst_2 [1, 2] : vector<1x8x512xf32> to vector<1xf32>
    %11 = vector.shape_cast %10 : vector<1xf32> to vector<1x1x1xf32>
    %12 = vector.extract %11[0, 0, 0] : f32 from vector<1x1x1xf32>
    %cst_3 = arith.constant 0.000000e+00 : f32
    %13 = vector.broadcast %cst_3 : f32 to vector<1x8x128xf32>
    %14 = vector.broadcast %12 : f32 to vector<1x8x128xf32>
    %15 = arith.addf %13, %14 : vector<1x8x128xf32>
    %c0_4 = arith.constant 0 : index
    %c0_5 = arith.constant 0 : index
    %c0_6 = arith.constant 0 : index
    %16 = vector.load %arg2[%c0_4, %c0_5, %c0_6] : memref<1x8x128xf32, #tpu.memory_space<vmem>>, vector<1x8x128xf32>
    tpu.vector_store %arg2[%c0_4, %c0_5, %c0_6], %15 {strides = array<i32>} : memref<1x8x128xf32, #tpu.memory_space<vmem>>, vector<1x8x128xf32>,
    return
  }
  func.func @transform_0(%arg0: i32) -> (i32, i32) {
    %c0_i32 = arith.constant 0 : i32
    %c0_i32_0 = arith.constant 0 : i32
    return %arg0, %c0_i32 : i32, i32
  }
  func.func @transform_1(%arg0: i32) -> (i32, i32, i32) {
    %c0_i32 = arith.constant 0 : i32
    %c0_i32_0 = arith.constant 0 : i32
    %c0_i32_1 = arith.constant 0 : i32
    return %arg0, %c0_i32, %c0_i32_0 : i32, i32, i32
  }
}

module attributes {stable_mosaic.version = 11 : i64} {
  func.func @kernel(%arg0: i32, %arg1: memref<1x9x128xf32, #tpu.memory_space<vmem>>, %arg2: memref<1x9x128xf32, #tpu.memory_space<vmem>>, %arg3: memref<3x4xf32, #tpu.memory_space<smem>>) attributes {dimension_semantics = [#tpu.dimension_semantics<arbitrary>], iteration_bounds = array<i64: 3>, scalar_prefetch = 0 : i64, scratch_operands = 0 : i64, tpu.core_type = #tpu.core_type<tc>, window_params = [{transform_indices = @transform_0, window_bounds = array<i64: 1, 9, 128>}, {transform_indices = @transform_1, window_bounds = array<i64: 1, 9, 128>}, {transform_indices = @transform_2, window_bounds = array<i64: 3, 4>}]} {
    %c0 = arith.constant 0 : index
    %c0_0 = arith.constant 0 : index
    %c0_1 = arith.constant 0 : index
    %0 = vector.load %arg1[%c0, %c0_0, %c0_1] : memref<1x9x128xf32, #tpu.memory_space<vmem>>, vector<1x9x128xf32>
    %1 = vector.shape_cast %0 : vector<1x9x128xf32> to vector<9x128xf32>
    %c0_2 = arith.constant 0 : index
    %c0_3 = arith.constant 0 : index
    %c0_4 = arith.constant 0 : index
    %2 = vector.load %arg2[%c0_2, %c0_3, %c0_4] : memref<1x9x128xf32, #tpu.memory_space<vmem>>, vector<1x9x128xf32>
    %3 = vector.shape_cast %2 : vector<1x9x128xf32> to vector<9x128xf32>
    %4 = vector.extract_strided_slice %3 {offsets = [0, 0], sizes = [1, 128], strides = [1, 1]} : vector<9x128xf32> to vector<1x128xf32>
    %5 = vector.extract_strided_slice %3 {offsets = [1, 0], sizes = [1, 128], strides = [1, 1]} : vector<9x128xf32> to vector<1x128xf32>
    %6 = vector.extract_strided_slice %3 {offsets = [2, 0], sizes = [1, 128], strides = [1, 1]} : vector<9x128xf32> to vector<1x128xf32>
    %7 = vector.extract_strided_slice %3 {offsets = [3, 0], sizes = [1, 128], strides = [1, 1]} : vector<9x128xf32> to vector<1x128xf32>
    %8 = vector.extract_strided_slice %3 {offsets = [4, 0], sizes = [1, 128], strides = [1, 1]} : vector<9x128xf32> to vector<1x128xf32>
    %9 = vector.extract_strided_slice %3 {offsets = [5, 0], sizes = [1, 128], strides = [1, 1]} : vector<9x128xf32> to vector<1x128xf32>
    %10 = vector.extract_strided_slice %3 {offsets = [6, 0], sizes = [1, 128], strides = [1, 1]} : vector<9x128xf32> to vector<1x128xf32>
    %11 = vector.extract_strided_slice %3 {offsets = [7, 0], sizes = [1, 128], strides = [1, 1]} : vector<9x128xf32> to vector<1x128xf32>
    %12 = vector.extract_strided_slice %3 {offsets = [8, 0], sizes = [1, 128], strides = [1, 1]} : vector<9x128xf32> to vector<1x128xf32>
    %13 = vector.extract_strided_slice %1 {offsets = [0, 0], sizes = [1, 128], strides = [1, 1]} : vector<9x128xf32> to vector<1x128xf32>
    %14 = arith.negf %13 : vector<1x128xf32>
    %15 = math.exp %14 : vector<1x128xf32>
    %cst = arith.constant 1.000000e+00 : f32
    %16 = vector.broadcast %cst : f32 to vector<1x128xf32>
    %17 = arith.addf %16, %15 : vector<1x128xf32>
    %18 = arith.divf %16, %17 : vector<1x128xf32>
    %cst_5 = arith.constant 2.000000e+00 : f32
    %19 = vector.broadcast %cst_5 : f32 to vector<1x128xf32>
    %20 = arith.mulf %18, %19 : vector<1x128xf32>
    %cst_6 = arith.constant 5.000000e-01 : f32
    %21 = vector.broadcast %cst_6 : f32 to vector<1x128xf32>
    %22 = arith.subf %20, %21 : vector<1x128xf32>
    %23 = vector.extract_strided_slice %1 {offsets = [1, 0], sizes = [1, 128], strides = [1, 1]} : vector<9x128xf32> to vector<1x128xf32>
    %24 = arith.negf %23 : vector<1x128xf32>
    %25 = math.exp %24 : vector<1x128xf32>
    %cst_7 = arith.constant 1.000000e+00 : f32
    %26 = vector.broadcast %cst_7 : f32 to vector<1x128xf32>
    %27 = arith.addf %26, %25 : vector<1x128xf32>
    %28 = arith.divf %26, %27 : vector<1x128xf32>
    %cst_8 = arith.constant 2.000000e+00 : f32
    %29 = vector.broadcast %cst_8 : f32 to vector<1x128xf32>
    %30 = arith.mulf %28, %29 : vector<1x128xf32>
    %cst_9 = arith.constant 5.000000e-01 : f32
    %31 = vector.broadcast %cst_9 : f32 to vector<1x128xf32>
    %32 = arith.subf %30, %31 : vector<1x128xf32>
    %33 = vector.extract_strided_slice %1 {offsets = [2, 0], sizes = [1, 128], strides = [1, 1]} : vector<9x128xf32> to vector<1x128xf32>
    %34 = arith.negf %33 : vector<1x128xf32>
    %35 = math.exp %34 : vector<1x128xf32>
    %cst_10 = arith.constant 1.000000e+00 : f32
    %36 = vector.broadcast %cst_10 : f32 to vector<1x128xf32>
    %37 = arith.addf %36, %35 : vector<1x128xf32>
    %38 = arith.divf %36, %37 : vector<1x128xf32>
    %cst_11 = arith.constant 2.000000e+00 : f32
    %39 = vector.broadcast %cst_11 : f32 to vector<1x128xf32>
    %40 = arith.mulf %38, %39 : vector<1x128xf32>
    %41 = arith.mulf %40, %40 : vector<1x128xf32>
    %42 = arith.mulf %41, %4 : vector<1x128xf32>
    %43 = vector.extract_strided_slice %1 {offsets = [3, 0], sizes = [1, 128], strides = [1, 1]} : vector<9x128xf32> to vector<1x128xf32>
    %44 = arith.negf %43 : vector<1x128xf32>
    %45 = math.exp %44 : vector<1x128xf32>
    %cst_12 = arith.constant 1.000000e+00 : f32
    %46 = vector.broadcast %cst_12 : f32 to vector<1x128xf32>
    %47 = arith.addf %46, %45 : vector<1x128xf32>
    %48 = arith.divf %46, %47 : vector<1x128xf32>
    %cst_13 = arith.constant 2.000000e+00 : f32
    %49 = vector.broadcast %cst_13 : f32 to vector<1x128xf32>
    %50 = arith.mulf %48, %49 : vector<1x128xf32>
    %51 = arith.mulf %50, %50 : vector<1x128xf32>
    %52 = arith.mulf %51, %5 : vector<1x128xf32>
    %53 = vector.extract_strided_slice %1 {offsets = [4, 0], sizes = [1, 128], strides = [1, 1]} : vector<9x128xf32> to vector<1x128xf32>
    %cst_14 = arith.constant 5.000000e-01 : f32
    %54 = vector.broadcast %cst_14 : f32 to vector<1x128xf32>
    %55 = arith.mulf %42, %54 : vector<1x128xf32>
    %56 = arith.subf %22, %55 : vector<1x128xf32>
    %cst_15 = arith.constant 5.000000e-01 : f32
    %57 = vector.broadcast %cst_15 : f32 to vector<1x128xf32>
    %58 = arith.mulf %42, %57 : vector<1x128xf32>
    %59 = arith.addf %22, %58 : vector<1x128xf32>
    %cst_16 = arith.constant 5.000000e-01 : f32
    %60 = vector.broadcast %cst_16 : f32 to vector<1x128xf32>
    %61 = arith.mulf %52, %60 : vector<1x128xf32>
    %62 = arith.subf %32, %61 : vector<1x128xf32>
    %cst_17 = arith.constant 5.000000e-01 : f32
    %63 = vector.broadcast %cst_17 : f32 to vector<1x128xf32>
    %64 = arith.mulf %52, %63 : vector<1x128xf32>
    %65 = arith.addf %32, %64 : vector<1x128xf32>
    %cst_18 = arith.constant 5.000000e-01 : f32
    %66 = vector.broadcast %cst_18 : f32 to vector<1x128xf32>
    %67 = arith.mulf %8, %66 : vector<1x128xf32>
    %68 = arith.subf %6, %67 : vector<1x128xf32>
    %cst_19 = arith.constant 5.000000e-01 : f32
    %69 = vector.broadcast %cst_19 : f32 to vector<1x128xf32>
    %70 = arith.mulf %8, %69 : vector<1x128xf32>
    %71 = arith.addf %6, %70 : vector<1x128xf32>
    %cst_20 = arith.constant 5.000000e-01 : f32
    %72 = vector.broadcast %cst_20 : f32 to vector<1x128xf32>
    %73 = arith.mulf %9, %72 : vector<1x128xf32>
    %74 = arith.subf %7, %73 : vector<1x128xf32>
    %cst_21 = arith.constant 5.000000e-01 : f32
    %75 = vector.broadcast %cst_21 : f32 to vector<1x128xf32>
    %76 = arith.mulf %9, %75 : vector<1x128xf32>
    %77 = arith.addf %7, %76 : vector<1x128xf32>
    %78 = arith.minimumf %59, %71 : vector<1x128xf32>
    %79 = arith.maximumf %56, %68 : vector<1x128xf32>
    %80 = arith.subf %78, %79 : vector<1x128xf32>
    %cst_22 = arith.constant 0.000000e+00 : f32
    %81 = vector.broadcast %cst_22 : f32 to vector<1x128xf32>
    %82 = arith.maximumf %80, %81 : vector<1x128xf32>
    %83 = arith.minimumf %65, %77 : vector<1x128xf32>
    %84 = arith.maximumf %62, %74 : vector<1x128xf32>
    %85 = arith.subf %83, %84 : vector<1x128xf32>
    %cst_23 = arith.constant 0.000000e+00 : f32
    %86 = vector.broadcast %cst_23 : f32 to vector<1x128xf32>
    %87 = arith.maximumf %85, %86 : vector<1x128xf32>
    %88 = arith.mulf %82, %87 : vector<1x128xf32>
    %89 = arith.subf %59, %56 : vector<1x128xf32>
    %90 = arith.subf %65, %62 : vector<1x128xf32>
    %91 = arith.mulf %89, %90 : vector<1x128xf32>
    %92 = arith.subf %71, %68 : vector<1x128xf32>
    %93 = arith.subf %77, %74 : vector<1x128xf32>
    %94 = arith.mulf %92, %93 : vector<1x128xf32>
    %95 = arith.addf %91, %94 : vector<1x128xf32>
    %96 = arith.subf %95, %88 : vector<1x128xf32>
    %97 = arith.divf %88, %96 : vector<1x128xf32>
    %98 = arith.maximumf %59, %71 : vector<1x128xf32>
    %99 = arith.minimumf %56, %68 : vector<1x128xf32>
    %100 = arith.subf %98, %99 : vector<1x128xf32>
    %cst_24 = arith.constant 1.000000e-16 : f32
    %101 = vector.broadcast %cst_24 : f32 to vector<1x128xf32>
    %102 = arith.addf %100, %101 : vector<1x128xf32>
    %103 = arith.maximumf %65, %77 : vector<1x128xf32>
    %104 = arith.minimumf %62, %74 : vector<1x128xf32>
    %105 = arith.subf %103, %104 : vector<1x128xf32>
    %106 = arith.mulf %102, %105 : vector<1x128xf32>
    %cst_25 = arith.constant 1.000000e-16 : f32
    %107 = vector.broadcast %cst_25 : f32 to vector<1x128xf32>
    %108 = arith.addf %106, %107 : vector<1x128xf32>
    %109 = arith.subf %108, %96 : vector<1x128xf32>
    %110 = arith.divf %109, %108 : vector<1x128xf32>
    %111 = arith.subf %97, %110 : vector<1x128xf32>
    %cst_26 = arith.constant 0.000000e+00 : f32
    %112 = vector.broadcast %cst_26 : f32 to vector<1x128xf32>
    %113 = arith.cmpf ogt, %11, %112 : vector<1x128xf32>
    %cst_27 = arith.constant 1.000000e+00 : f32
    %114 = vector.broadcast %cst_27 : f32 to vector<1x128xf32>
    %115 = arith.subf %114, %111 : vector<1x128xf32>
    %cst_28 = arith.constant 0.000000e+00 : f32
    %116 = vector.broadcast %cst_28 : f32 to vector<1x128xf32>
    %117 = arith.select %113, %115, %116 : vector<1x128xi1>, vector<1x128xf32>
    %118 = vector.shape_cast %117 : vector<1x128xf32> to vector<1x1x128xf32>
    %cst_29 = arith.constant dense<0.000000e+00> : vector<1xf32>
    %119 = vector.multi_reduction <add>, %118, %cst_29 [1, 2] : vector<1x1x128xf32> to vector<1xf32>
    %120 = vector.shape_cast %119 : vector<1xf32> to vector<1x1x1xf32>
    %121 = vector.extract %120[0, 0, 0] : f32 from vector<1x1x1xf32>
    %122 = vector.shape_cast %11 : vector<1x128xf32> to vector<1x1x128xf32>
    %cst_30 = arith.constant dense<0.000000e+00> : vector<1xf32>
    %123 = vector.multi_reduction <add>, %122, %cst_30 [1, 2] : vector<1x1x128xf32> to vector<1xf32>
    %124 = vector.shape_cast %123 : vector<1xf32> to vector<1x1x1xf32>
    %125 = vector.extract %124[0, 0, 0] : f32 from vector<1x1x1xf32>
    %cst_31 = arith.constant 0.000000e+00 : f32
    %126 = vector.broadcast %cst_31 : f32 to vector<1x128xf32>
    %127 = arith.cmpf ogt, %12, %126 : vector<1x128xf32>
    %cst_32 = arith.constant 0.000000e+00 : f32
    %128 = vector.broadcast %cst_32 : f32 to vector<1x128xf32>
    %129 = arith.maximumf %111, %128 : vector<1x128xf32>
    %130 = arith.mulf %53, %129 : vector<1x128xf32>
    %cst_33 = arith.constant 0.000000e+00 : f32
    %131 = vector.broadcast %cst_33 : f32 to vector<1x128xf32>
    %132 = arith.select %127, %130, %131 : vector<1x128xi1>, vector<1x128xf32>
    %133 = vector.shape_cast %132 : vector<1x128xf32> to vector<1x1x128xf32>
    %cst_34 = arith.constant dense<0.000000e+00> : vector<1xf32>
    %134 = vector.multi_reduction <add>, %133, %cst_34 [1, 2] : vector<1x1x128xf32> to vector<1xf32>
    %135 = vector.shape_cast %134 : vector<1xf32> to vector<1x1x1xf32>
    %136 = vector.extract %135[0, 0, 0] : f32 from vector<1x1x1xf32>
    %137 = vector.extract_strided_slice %1 {offsets = [5, 0], sizes = [4, 128], strides = [1, 1]} : vector<9x128xf32> to vector<4x128xf32>
    %138 = tpu.iota {dimensions = array<i32: 0>} : vector<4x128xi32>
    %139 = arith.fptosi %10 : vector<1x128xf32> to vector<1x128xi32>
    %140 = vector.broadcast %139 : vector<1x128xi32> to vector<4x128xi32>
    %141 = arith.cmpi eq, %138, %140 : vector<4x128xi32>
    %142 = arith.extui %141 : vector<4x128xi1> to vector<4x128xi32>
    %143 = arith.sitofp %142 : vector<4x128xi32> to vector<4x128xf32>
    %cst_35 = arith.constant 0.000000e+00 : f32
    %144 = vector.broadcast %cst_35 : f32 to vector<4x128xf32>
    %145 = arith.maximumf %137, %144 : vector<4x128xf32>
    %146 = arith.mulf %137, %143 : vector<4x128xf32>
    %147 = arith.subf %145, %146 : vector<4x128xf32>
    %148 = math.absf %137 : vector<4x128xf32>
    %cst_36 = arith.constant 0.000000e+00 : f32
    %149 = vector.broadcast %cst_36 : f32 to vector<4x128xf32>
    %150 = arith.subf %149, %148 : vector<4x128xf32>
    %151 = math.exp %150 : vector<4x128xf32>
    %152 = math.log1p %151 : vector<4x128xf32>
    %153 = arith.addf %147, %152 : vector<4x128xf32>
    %cst_37 = arith.constant 0.000000e+00 : f32
    %154 = vector.broadcast %cst_37 : f32 to vector<1x128xf32>
    %155 = arith.cmpf ogt, %11, %154 : vector<1x128xf32>
    %cst_38 = arith.constant 0.000000e+00 : f32
    %156 = vector.shape_cast %155 : vector<1x128xi1> to vector<1x128xi1>
    %157 = vector.broadcast %156 : vector<1x128xi1> to vector<4x128xi1>
    %158 = vector.broadcast %cst_38 : f32 to vector<4x128xf32>
    %159 = arith.select %157, %153, %158 : vector<4x128xi1>, vector<4x128xf32>
    %160 = vector.shape_cast %159 : vector<4x128xf32> to vector<1x4x128xf32>
    %cst_39 = arith.constant dense<0.000000e+00> : vector<1xf32>
    %161 = vector.multi_reduction <add>, %160, %cst_39 [1, 2] : vector<1x4x128xf32> to vector<1xf32>
    %162 = vector.shape_cast %161 : vector<1xf32> to vector<1x1x1xf32>
    %163 = vector.extract %162[0, 0, 0] : f32 from vector<1x1x1xf32>
    %164 = arith.index_cast %arg0 : i32 to index
    %c0_40 = arith.constant 0 : index
    %165 = memref.load %arg3[%164, %c0_40] : memref<3x4xf32, #tpu.memory_space<smem>>
    memref.store %121, %arg3[%164, %c0_40] : memref<3x4xf32, #tpu.memory_space<smem>>
    %166 = arith.index_cast %arg0 : i32 to index
    %c1 = arith.constant 1 : index
    %167 = memref.load %arg3[%166, %c1] : memref<3x4xf32, #tpu.memory_space<smem>>
    memref.store %163, %arg3[%166, %c1] : memref<3x4xf32, #tpu.memory_space<smem>>
    %168 = arith.index_cast %arg0 : i32 to index
    %c2 = arith.constant 2 : index
    %169 = memref.load %arg3[%168, %c2] : memref<3x4xf32, #tpu.memory_space<smem>>
    memref.store %125, %arg3[%168, %c2] : memref<3x4xf32, #tpu.memory_space<smem>>
    %170 = arith.index_cast %arg0 : i32 to index
    %c3 = arith.constant 3 : index
    %171 = memref.load %arg3[%170, %c3] : memref<3x4xf32, #tpu.memory_space<smem>>
    memref.store %136, %arg3[%170, %c3] : memref<3x4xf32, #tpu.memory_space<smem>>
    return
  }
  func.func @transform_0(%arg0: i32) -> (i32, i32, i32) {
    %c0_i32 = arith.constant 0 : i32
    %c0_i32_0 = arith.constant 0 : i32
    %c0_i32_1 = arith.constant 0 : i32
    return %arg0, %c0_i32, %c0_i32_0 : i32, i32, i32
  }
  func.func @transform_1(%arg0: i32) -> (i32, i32, i32) {
    %c0_i32 = arith.constant 0 : i32
    %c0_i32_0 = arith.constant 0 : i32
    %c0_i32_1 = arith.constant 0 : i32
    return %arg0, %c0_i32, %c0_i32_0 : i32, i32, i32
  }
  func.func @transform_2(%arg0: i32) -> (i32, i32) {
    %c0_i32 = arith.constant 0 : i32
    %c0_i32_0 = arith.constant 0 : i32
    %c0_i32_1 = arith.constant 0 : i32
    return %c0_i32, %c0_i32_0 : i32, i32
  }
}

</mosaic_0001>

<llo_original>
// kernel: squeeze.99
$region0: #{squeeze.99}
  %s0 = inlined_call_operand.vmem [shape: f32[2,3,1,4,4], index: 0, kind: input, shape index: {}]
  %s1 = inlined_call_operand.vmem [shape: f32[96], index: 1, kind: output, shape index: {}]
  $region1: #{squeeze.99} parent=0
    #allocation0 [shape = 'u8[4096]{0}', space=vmem, size = 0x1000, scoped, tag = 'scoped mem for output reshape']
    #allocation1 [shape = 'u8[24576]{0}', space=vmem, size = 0x6000, scoped, tag = 'scoped mem for input reshape']
    %s3 = sshllo.u32 0, 4
    %s4 = smul.addr 4, 5
    %s5 = scalar_lea.vmem %s0, %s4
    %v6 = vld [vmem:[%s5] sm:%s3]
    %s7 = scalar_lea.vmem [#allocation1], 40
    %8 = vst [vmem:[%s7] sm:%s3] %v6
    %s9 = smul.addr 4, 4
    %s10 = scalar_lea.vmem %s0, %s9
    %v11 = vld [vmem:[%s10] sm:%s3]
    %s12 = scalar_lea.vmem [#allocation1], 32
    %13 = vst [vmem:[%s12] sm:%s3] %v11
    %s14 = smul.addr 4, 3
    %s15 = scalar_lea.vmem %s0, %s14
    %v16 = vld [vmem:[%s15] sm:%s3]
    %s17 = scalar_lea.vmem [#allocation1], 24
    %18 = vst [vmem:[%s17] sm:%s3] %v16
    %s19 = smul.addr 4, 2
    %s20 = scalar_lea.vmem %s0, %s19
    %v21 = vld [vmem:[%s20] sm:%s3]
    %s22 = scalar_lea.vmem [#allocation1], 16
    %23 = vst [vmem:[%s22] sm:%s3] %v21
    %s24 = scalar_lea.vmem %s0, 4
    %v25 = vld [vmem:[%s24] sm:%s3]
    %s26 = scalar_lea.vmem [#allocation1], 8
    %27 = vst [vmem:[%s26] sm:%s3] %v25
    %v28 = vld [vmem:[%s0] sm:%s3]
    %29 = vst [vmem:[#allocation1] sm:%s3] %v28
    %v30 = vld [vmem:[#allocation1] sm:$0x1]
    %vm31 = vcmask 31744
    %32 = vst.msk [vmem:[#allocation0] sm:$0x1] %vm31, %v30
    %s33 = scalar_lea.vmem [#allocation1], 43
    %v34 = vld [vmem:[%s33] sm:$0x1]
    %35 = vrot.lane.b32.xlu0 %v34, 92
    %v36 = vpop.permute.xlu0 %35
    %vm37 = vcmask 786144
    %38 = vst.msk [vmem:[#allocation0] sm:$0x1] %vm37, %v36
    %s39 = scalar_lea.vmem [#allocation1], 42
    %v40 = vld [vmem:[%s39] sm:$0x1]
    %41 = vrot.lane.b32.xlu0 %v40, 88
    %v42 = vpop.permute.xlu0 %41
    %vm43 = vcmask 753344
    %44 = vst.msk [vmem:[#allocation0] sm:$0x1] %vm43, %v42
    %s45 = scalar_lea.vmem [#allocation1], 41
    %v46 = vld [vmem:[%s45] sm:$0x1]
    %47 = vrot.lane.b32.xlu0 %v46, 84
    %v48 = vpop.permute.xlu0 %47
    %vm49 = vcmask 720544
    %50 = vst.msk [vmem:[#allocation0] sm:$0x1] %vm49, %v48
    %s51 = scalar_lea.vmem [#allocation1], 40
    %v52 = vld [vmem:[%s51] sm:$0x1]
    %53 = vrot.lane.b32.xlu0 %v52, 80
    %v54 = vpop.permute.xlu0 %53
    %vm55 = vcmask 687744
    %56 = vst.msk [vmem:[#allocation0] sm:$0x1] %vm55, %v54
    %s57 = scalar_lea.vmem [#allocation1], 35
    %v58 = vld [vmem:[%s57] sm:$0x1]
    %59 = vrot.lane.b32.xlu0 %v58, 76
    %v60 = vpop.permute.xlu0 %59
    %vm61 = vcmask 654944
    %62 = vst.msk [vmem:[#allocation0] sm:$0x1] %vm61, %v60
    %s63 = scalar_lea.vmem [#allocation1], 34
    %v64 = vld [vmem:[%s63] sm:$0x1]
    %65 = vrot.lane.b32.xlu0 %v64, 72
    %v66 = vpop.permute.xlu0 %65
    %vm67 = vcmask 622144
    %68 = vst.msk [vmem:[#allocation0] sm:$0x1] %vm67, %v66
    %s69 = scalar_lea.vmem [#allocation1], 33
    %v70 = vld [vmem:[%s69] sm:$0x1]
    %71 = vrot.lane.b32.xlu0 %v70, 68
    %v72 = vpop.permute.xlu0 %71
    %vm73 = vcmask 589344
    %74 = vst.msk [vmem:[#allocation0] sm:$0x1] %vm73, %v72
    %s75 = scalar_lea.vmem [#allocation1], 32
    %v76 = vld [vmem:[%s75] sm:$0x1]
    %77 = vrot.lane.b32.xlu0 %v76, 64
    %v78 = vpop.permute.xlu0 %77
    %vm79 = vcmask 556544
    %80 = vst.msk [vmem:[#allocation0] sm:$0x1] %vm79, %v78
    %s81 = scalar_lea.vmem [#allocation1], 27
    %v82 = vld [vmem:[%s81] sm:$0x1]
    %83 = vrot.lane.b32.xlu0 %v82, 60
    %v84 = vpop.permute.xlu0 %83
    %vm85 = vcmask 523744
    %86 = vst.msk [vmem:[#allocation0] sm:$0x1] %vm85, %v84
    %s87 = scalar_lea.vmem [#allocation1], 26
    %v88 = vld [vmem:[%s87] sm:$0x1]
    %89 = vrot.lane.b32.xlu0 %v88, 56
    %v90 = vpop.permute.xlu0 %89
    %vm91 = vcmask 490944
    %92 = vst.msk [vmem:[#allocation0] sm:$0x1] %vm91, %v90
    %s93 = scalar_lea.vmem [#allocation1], 25
    %v94 = vld [vmem:[%s93] sm:$0x1]
    %95 = vrot.lane.b32.xlu0 %v94, 52
    %v96 = vpop.permute.xlu0 %95
    %vm97 = vcmask 458144
    %98 = vst.msk [vmem:[#allocation0] sm:$0x1] %vm97, %v96
    %s99 = scalar_lea.vmem [#allocation1], 24
    %v100 = vld [vmem:[%s99] sm:$0x1]
    %101 = vrot.lane.b32.xlu0 %v100, 48
    %v102 = vpop.permute.xlu0 %101
    %vm103 = vcmask 425344
    %104 = vst.msk [vmem:[#allocation0] sm:$0x1] %vm103, %v102
    %s105 = scalar_lea.vmem [#allocation1], 19
    %v106 = vld [vmem:[%s105] sm:$0x1]
    %107 = vrot.lane.b32.xlu0 %v106, 44
    %v108 = vpop.permute.xlu0 %107
    %vm109 = vcmask 392544
    %110 = vst.msk [vmem:[#allocation0] sm:$0x1] %vm109, %v108
    %s111 = scalar_lea.vmem [#allocation1], 18
    %v112 = vld [vmem:[%s111] sm:$0x1]
    %113 = vrot.lane.b32.xlu0 %v112, 40
    %v114 = vpop.permute.xlu0 %113
    %vm115 = vcmask 359744
    %116 = vst.msk [vmem:[#allocation0] sm:$0x1] %vm115, %v114
    %s117 = scalar_lea.vmem [#allocation1], 17
    %v118 = vld [vmem:[%s117] sm:$0x1]
    %119 = vrot.lane.b32.xlu0 %v118, 36
    %v120 = vpop.permute.xlu0 %119
    %vm121 = vcmask 326944
    %122 = vst.msk [vmem:[#allocation0] sm:$0x1] %vm121, %v120
    %s123 = scalar_lea.vmem [#allocation1], 16
    %v124 = vld [vmem:[%s123] sm:$0x1]
    %125 = vrot.lane.b32.xlu0 %v124, 32
    %v126 = vpop.permute.xlu0 %125
    %vm127 = vcmask 294144
    %128 = vst.msk [vmem:[#allocation0] sm:$0x1] %vm127, %v126
    %s129 = scalar_lea.vmem [#allocation1], 11
    %v130 = vld [vmem:[%s129] sm:$0x1]
    %131 = vrot.lane.b32.xlu0 %v130, 28
    %v132 = vpop.permute.xlu0 %131
    %vm133 = vcmask 261344
    %134 = vst.msk [vmem:[#allocation0] sm:$0x1] %vm133, %v132
    %s135 = scalar_lea.vmem [#allocation1], 10
    %v136 = vld [vmem:[%s135] sm:$0x1]
    %137 = vrot.lane.b32.xlu0 %v136, 24
    %v138 = vpop.permute.xlu0 %137
    %vm139 = vcmask 228544
    %140 = vst.msk [vmem:[#allocation0] sm:$0x1] %vm139, %v138
    %s141 = scalar_lea.vmem [#allocation1], 9
    %v142 = vld [vmem:[%s141] sm:$0x1]
    %143 = vrot.lane.b32.xlu0 %v142, 20
    %v144 = vpop.permute.xlu0 %143
    %vm145 = vcmask 195744
    %146 = vst.msk [vmem:[#allocation0] sm:$0x1] %vm145, %v144
    %s147 = scalar_lea.vmem [#allocation1], 8
    %v148 = vld [vmem:[%s147] sm:$0x1]
    %149 = vrot.lane.b32.xlu0 %v148, 16
    %v150 = vpop.permute.xlu0 %149
    %vm151 = vcmask 162944
    %152 = vst.msk [vmem:[#allocation0] sm:$0x1] %vm151, %v150
    %s153 = scalar_lea.vmem [#allocation1], 3
    %v154 = vld [vmem:[%s153] sm:$0x1]
    %155 = vrot.lane.b32.xlu0 %v154, 12
    %v156 = vpop.permute.xlu0 %155
    %vm157 = vcmask 130144
    %158 = vst.msk [vmem:[#allocation0] sm:$0x1] %vm157, %v156
    %s159 = scalar_lea.vmem [#allocation1], 2
    %v160 = vld [vmem:[%s159] sm:$0x1]
    %161 = vrot.lane.b32.xlu0 %v160, 8
    %v162 = vpop.permute.xlu0 %161
    %vm163 = vcmask 97344
    %164 = vst.msk [vmem:[#allocation0] sm:$0x1] %vm163, %v162
    %s165 = scalar_lea.vmem [#allocation1], 1
    %v166 = vld [vmem:[%s165] sm:$0x1]
    %167 = vrot.lane.b32.xlu0 %v166, 4
    %v168 = vpop.permute.xlu0 %167
    %vm169 = vcmask 64544
    %170 = vst.msk [vmem:[#allocation0] sm:$0x1] %vm169, %v168
    %s172 = sshllo.u32 0, 1
    %v174 = vld [vmem:[#allocation0] sm:%s172]
    %s175 = sshllo.u32 0, 1
    %176 = vst [vmem:[%s1] sm:%s175] %v174

// kernel: squeeze.82
$region0: #{squeeze.82}
  %s0 = inlined_call_operand.vmem [shape: f32[2,3,1,8,8], index: 0, kind: input, shape index: {}]
  %s1 = inlined_call_operand.vmem [shape: f32[384], index: 1, kind: output, shape index: {}]
  $region1: #{squeeze.82} parent=0
    #allocation0 [shape = 'u8[4096]{0}', space=vmem, size = 0x1000, scoped, tag = 'scoped mem for output reshape']
    %s2 = smov 3
    %v3 = vld [vmem:[%s0] ss:$16 sm:%s2]
    %s4 = scalar_lea.vmem %s0, 30
    %v5 = vld [vmem:[%s4] sm:$0x4]
    %vm6 = vcmask 1042434
    %v7 = vsel %vm6, %v5, %v3
    %vm8 = vcmask 64512
    %9 = vst.msk [vmem:[#allocation0] sm:$0x7] %vm8, %v7
    %s10 = scalar_lea.vmem %s0, 15
    %s11 = smov 3
    %v12 = vld [vmem:[%s10] ss:$16 sm:%s11]
    %s13 = scalar_lea.vmem %s0, 45
    %v14 = vld [vmem:[%s13] sm:$0x4]
    %vm15 = vcmask 1042434
    %v16 = vsel %vm15, %v14, %v12
    %17 = vrot.lane.b32.xlu0 %v16, 120
    %v18 = vpop.permute.xlu0 %17
    %vm19 = vcmask 1048512
    %20 = vst.msk [vmem:[#allocation0] sm:$0x7] %vm19, %v18
    %s21 = scalar_lea.vmem %s0, 14
    %s22 = smov 3
    %v23 = vld [vmem:[%s21] ss:$16 sm:%s22]
    %s24 = scalar_lea.vmem %s0, 44
    %v25 = vld [vmem:[%s24] sm:$0x4]
    %vm26 = vcmask 1042434
    %v27 = vsel %vm26, %v25, %v23
    %28 = vrot.lane.b32.xlu0 %v27, 112
    %v29 = vpop.permute.xlu0 %28
    %vm30 = vcmask 982912
    %31 = vst.msk [vmem:[#allocation0] sm:$0x7] %vm30, %v29
    %s32 = scalar_lea.vmem %s0, 13
    %s33 = smov 3
    %v34 = vld [vmem:[%s32] ss:$16 sm:%s33]
    %s35 = scalar_lea.vmem %s0, 43
    %v36 = vld [vmem:[%s35] sm:$0x4]
    %vm37 = vcmask 1042434
    %v38 = vsel %vm37, %v36, %v34
    %39 = vrot.lane.b32.xlu0 %v38, 104
    %v40 = vpop.permute.xlu0 %39
    %vm41 = vcmask 917312
    %42 = vst.msk [vmem:[#allocation0] sm:$0x7] %vm41, %v40
    %s43 = scalar_lea.vmem %s0, 12
    %s44 = smov 3
    %v45 = vld [vmem:[%s43] ss:$16 sm:%s44]
    %s46 = scalar_lea.vmem %s0, 42
    %v47 = vld [vmem:[%s46] sm:$0x4]
    %vm48 = vcmask 1042434
    %v49 = vsel %vm48, %v47, %v45
    %50 = vrot.lane.b32.xlu0 %v49, 96
    %v51 = vpop.permute.xlu0 %50
    %vm52 = vcmask 851712
    %53 = vst.msk [vmem:[#allocation0] sm:$0x7] %vm52, %v51
    %s54 = scalar_lea.vmem %s0, 11
    %s55 = smov 3
    %v56 = vld [vmem:[%s54] ss:$16 sm:%s55]
    %s57 = scalar_lea.vmem %s0, 41
    %v58 = vld [vmem:[%s57] sm:$0x4]
    %vm59 = vcmask 1042434
    %v60 = vsel %vm59, %v58, %v56
    %61 = vrot.lane.b32.xlu0 %v60, 88
    %v62 = vpop.permute.xlu0 %61
    %vm63 = vcmask 786112
    %64 = vst.msk [vmem:[#allocation0] sm:$0x7] %vm63, %v62
    %s65 = scalar_lea.vmem %s0, 10
    %s66 = smov 3
    %v67 = vld [vmem:[%s65] ss:$16 sm:%s66]
    %s68 = scalar_lea.vmem %s0, 40
    %v69 = vld [vmem:[%s68] sm:$0x4]
    %vm70 = vcmask 1042434
    %v71 = vsel %vm70, %v69, %v67
    %72 = vrot.lane.b32.xlu0 %v71, 80
    %v73 = vpop.permute.xlu0 %72
    %vm74 = vcmask 720512
    %75 = vst.msk [vmem:[#allocation0] sm:$0x7] %vm74, %v73
    %s76 = scalar_lea.vmem %s0, 9
    %s77 = smov 3
    %v78 = vld [vmem:[%s76] ss:$16 sm:%s77]
    %s79 = scalar_lea.vmem %s0, 39
    %v80 = vld [vmem:[%s79] sm:$0x4]
    %vm81 = vcmask 1042434
    %v82 = vsel %vm81, %v80, %v78
    %83 = vrot.lane.b32.xlu0 %v82, 72
    %v84 = vpop.permute.xlu0 %83
    %vm85 = vcmask 654912
    %86 = vst.msk [vmem:[#allocation0] sm:$0x7] %vm85, %v84
    %s87 = scalar_lea.vmem %s0, 8
    %s88 = smov 3
    %v89 = vld [vmem:[%s87] ss:$16 sm:%s88]
    %s90 = scalar_lea.vmem %s0, 38
    %v91 = vld [vmem:[%s90] sm:$0x4]
    %vm92 = vcmask 1042434
    %v93 = vsel %vm92, %v91, %v89
    %94 = vrot.lane.b32.xlu0 %v93, 64
    %v95 = vpop.permute.xlu0 %94
    %vm96 = vcmask 589312
    %97 = vst.msk [vmem:[#allocation0] sm:$0x7] %vm96, %v95
    %s98 = scalar_lea.vmem %s0, 7
    %s99 = smov 3
    %v100 = vld [vmem:[%s98] ss:$16 sm:%s99]
    %s101 = scalar_lea.vmem %s0, 37
    %v102 = vld [vmem:[%s101] sm:$0x4]
    %vm103 = vcmask 1042434
    %v104 = vsel %vm103, %v102, %v100
    %105 = vrot.lane.b32.xlu0 %v104, 56
    %v106 = vpop.permute.xlu0 %105
    %vm107 = vcmask 523712
    %108 = vst.msk [vmem:[#allocation0] sm:$0x7] %vm107, %v106
    %s109 = scalar_lea.vmem %s0, 6
    %s110 = smov 3
    %v111 = vld [vmem:[%s109] ss:$16 sm:%s110]
    %s112 = scalar_lea.vmem %s0, 36
    %v113 = vld [vmem:[%s112] sm:$0x4]
    %vm114 = vcmask 1042434
    %v115 = vsel %vm114, %v113, %v111
    %116 = vrot.lane.b32.xlu0 %v115, 48
    %v117 = vpop.permute.xlu0 %116
    %vm118 = vcmask 458112
    %119 = vst.msk [vmem:[#allocation0] sm:$0x7] %vm118, %v117
    %s120 = scalar_lea.vmem %s0, 5
    %s121 = smov 3
    %v122 = vld [vmem:[%s120] ss:$16 sm:%s121]
    %s123 = scalar_lea.vmem %s0, 35
    %v124 = vld [vmem:[%s123] sm:$0x4]
    %vm125 = vcmask 1042434
    %v126 = vsel %vm125, %v124, %v122
    %127 = vrot.lane.b32.xlu0 %v126, 40
    %v128 = vpop.permute.xlu0 %127
    %vm129 = vcmask 392512
    %130 = vst.msk [vmem:[#allocation0] sm:$0x7] %vm129, %v128
    %s131 = scalar_lea.vmem %s0, 4
    %s132 = smov 3
    %v133 = vld [vmem:[%s131] ss:$16 sm:%s132]
    %s134 = scalar_lea.vmem %s0, 34
    %v135 = vld [vmem:[%s134] sm:$0x4]
    %vm136 = vcmask 1042434
    %v137 = vsel %vm136, %v135, %v133
    %138 = vrot.lane.b32.xlu0 %v137, 32
    %v139 = vpop.permute.xlu0 %138
    %vm140 = vcmask 326912
    %141 = vst.msk [vmem:[#allocation0] sm:$0x7] %vm140, %v139
    %s142 = scalar_lea.vmem %s0, 3
    %s143 = smov 3
    %v144 = vld [vmem:[%s142] ss:$16 sm:%s143]
    %s145 = scalar_lea.vmem %s0, 33
    %v146 = vld [vmem:[%s145] sm:$0x4]
    %vm147 = vcmask 1042434
    %v148 = vsel %vm147, %v146, %v144
    %149 = vrot.lane.b32.xlu0 %v148, 24
    %v150 = vpop.permute.xlu0 %149
    %vm151 = vcmask 261312
    %152 = vst.msk [vmem:[#allocation0] sm:$0x7] %vm151, %v150
    %s153 = scalar_lea.vmem %s0, 2
    %s154 = smov 3
    %v155 = vld [vmem:[%s153] ss:$16 sm:%s154]
    %s156 = scalar_lea.vmem %s0, 32
    %v157 = vld [vmem:[%s156] sm:$0x4]
    %vm158 = vcmask 1042434
    %v159 = vsel %vm158, %v157, %v155
    %160 = vrot.lane.b32.xlu0 %v159, 16
    %v161 = vpop.permute.xlu0 %160
    %vm162 = vcmask 195712
    %163 = vst.msk [vmem:[#allocation0] sm:$0x7] %vm162, %v161
    %s164 = scalar_lea.vmem %s0, 1
    %s165 = smov 3
    %v166 = vld [vmem:[%s164] ss:$16 sm:%s165]
    %s167 = scalar_lea.vmem %s0, 31
    %v168 = vld [vmem:[%s167] sm:$0x4]
    %vm169 = vcmask 1042434
    %v170 = vsel %vm169, %v168, %v166
    %171 = vrot.lane.b32.xlu0 %v170, 8
    %v172 = vpop.permute.xlu0 %171
    %vm173 = vcmask 130112
    %174 = vst.msk [vmem:[#allocation0] sm:$0x7] %vm173, %v172
    %s176 = sshllo.u32 0, 4
    %v178 = vld [vmem:[#allocation0] sm:%s176]
    %s179 = sshllo.u32 0, 4
    %180 = vst [vmem:[%s1] sm:%s179] %v178

// kernel: squeeze.65
$region0: #{squeeze.65}
  %s0 = inlined_call_operand.vmem [shape: f32[2,3,1,16,16], index: 0, kind: input, shape index: {}]
  %s1 = inlined_call_operand.vmem [shape: f32[1536], index: 1, kind: output, shape index: {}]
  %v2 = vld [vmem:[%s0] ss:$8 sm:$0xf]
  %v3 = vld [vmem:[%s0] ss:$8 sm:$0xf0]
  %vm4 = vcmask 1047556
  %v5 = vsel %vm4, %v3, %v2
  %vm6 = vcmask 130048
  %7 = vst.msk [vmem:[%s1] sm:$0xff] %vm6, %v5
  %s8 = scalar_lea.vmem %s0, 64
  %v9 = vld [vmem:[%s8] ss:$8 sm:$0xf]
  %vm10 = vcmask 130048
  %s11 = scalar_lea.vmem %s1, 8
  %12 = vst.msk [vmem:[%s11] sm:$0xf] %vm10, %v9
  %s13 = scalar_lea.vmem %s0, 7
  %v14 = vld [vmem:[%s13] ss:$8 sm:$0xf]
  %s15 = scalar_lea.vmem %s0, 7
  %v16 = vld [vmem:[%s15] ss:$8 sm:$0xf0]
  %vm17 = vcmask 1047556
  %v18 = vsel %vm17, %v16, %v14
  %19 = vrot.lane.b32.xlu0 %v18, 112
  %v20 = vpop.permute.xlu0 %19
  %vm21 = vcmask 1048448
  %22 = vst.msk [vmem:[%s1] sm:$0xff] %vm21, %v20
  %s23 = scalar_lea.vmem %s0, 71
  %v24 = vld [vmem:[%s23] ss:$8 sm:$0xf]
  %25 = vrot.lane.b32.xlu0 %v24, 112
  %v26 = vpop.permute.xlu0 %25
  %vm27 = vcmask 1048448
  %s28 = scalar_lea.vmem %s1, 8
  %29 = vst.msk [vmem:[%s28] sm:$0xf] %vm27, %v26
  %s30 = scalar_lea.vmem %s0, 6
  %v31 = vld [vmem:[%s30] ss:$8 sm:$0xf]
  %s32 = scalar_lea.vmem %s0, 6
  %v33 = vld [vmem:[%s32] ss:$8 sm:$0xf0]
  %vm34 = vcmask 1047556
  %v35 = vsel %vm34, %v33, %v31
  %36 = vrot.lane.b32.xlu0 %v35, 96
  %v37 = vpop.permute.xlu0 %36
  %vm38 = vcmask 917248
  %39 = vst.msk [vmem:[%s1] sm:$0xff] %vm38, %v37
  %s40 = scalar_lea.vmem %s0, 70
  %v41 = vld [vmem:[%s40] ss:$8 sm:$0xf]
  %42 = vrot.lane.b32.xlu0 %v41, 96
  %v43 = vpop.permute.xlu0 %42
  %vm44 = vcmask 917248
  %s45 = scalar_lea.vmem %s1, 8
  %46 = vst.msk [vmem:[%s45] sm:$0xf] %vm44, %v43
  %s47 = scalar_lea.vmem %s0, 5
  %v48 = vld [vmem:[%s47] ss:$8 sm:$0xf]
  %s49 = scalar_lea.vmem %s0, 5
  %v50 = vld [vmem:[%s49] ss:$8 sm:$0xf0]
  %vm51 = vcmask 1047556
  %v52 = vsel %vm51, %v50, %v48
  %53 = vrot.lane.b32.xlu0 %v52, 80
  %v54 = vpop.permute.xlu0 %53
  %vm55 = vcmask 786048
  %56 = vst.msk [vmem:[%s1] sm:$0xff] %vm55, %v54
  %s57 = scalar_lea.vmem %s0, 69
  %v58 = vld [vmem:[%s57] ss:$8 sm:$0xf]
  %59 = vrot.lane.b32.xlu0 %v58, 80
  %v60 = vpop.permute.xlu0 %59
  %vm61 = vcmask 786048
  %s62 = scalar_lea.vmem %s1, 8
  %63 = vst.msk [vmem:[%s62] sm:$0xf] %vm61, %v60
  %s64 = scalar_lea.vmem %s0, 4
  %v65 = vld [vmem:[%s64] ss:$8 sm:$0xf]
  %s66 = scalar_lea.vmem %s0, 4
  %v67 = vld [vmem:[%s66] ss:$8 sm:$0xf0]
  %vm68 = vcmask 1047556
  %v69 = vsel %vm68, %v67, %v65
  %70 = vrot.lane.b32.xlu0 %v69, 64
  %v71 = vpop.permute.xlu0 %70
  %vm72 = vcmask 654848
  %73 = vst.msk [vmem:[%s1] sm:$0xff] %vm72, %v71
  %s74 = scalar_lea.vmem %s0, 68
  %v75 = vld [vmem:[%s74] ss:$8 sm:$0xf]
  %76 = vrot.lane.b32.xlu0 %v75, 64
  %v77 = vpop.permute.xlu0 %76
  %vm78 = vcmask 654848
  %s79 = scalar_lea.vmem %s1, 8
  %80 = vst.msk [vmem:[%s79] sm:$0xf] %vm78, %v77
  %s81 = scalar_lea.vmem %s0, 3
  %v82 = vld [vmem:[%s81] ss:$8 sm:$0xf]
  %s83 = scalar_lea.vmem %s0, 3
  %v84 = vld [vmem:[%s83] ss:$8 sm:$0xf0]
  %vm85 = vcmask 1047556
  %v86 = vsel %vm85, %v84, %v82
  %87 = vrot.lane.b32.xlu0 %v86, 48
  %v88 = vpop.permute.xlu0 %87
  %vm89 = vcmask 523648
  %90 = vst.msk [vmem:[%s1] sm:$0xff] %vm89, %v88
  %s91 = scalar_lea.vmem %s0, 67
  %v92 = vld [vmem:[%s91] ss:$8 sm:$0xf]
  %93 = vrot.lane.b32.xlu0 %v92, 48
  %v94 = vpop.permute.xlu0 %93
  %vm95 = vcmask 523648
  %s96 = scalar_lea.vmem %s1, 8
  %97 = vst.msk [vmem:[%s96] sm:$0xf] %vm95, %v94
  %s98 = scalar_lea.vmem %s0, 2
  %v99 = vld [vmem:[%s98] ss:$8 sm:$0xf]
  %s100 = scalar_lea.vmem %s0, 2
  %v101 = vld [vmem:[%s100] ss:$8 sm:$0xf0]
  %vm102 = vcmask 1047556
  %v103 = vsel %vm102, %v101, %v99
  %104 = vrot.lane.b32.xlu0 %v103, 32
  %v105 = vpop.permute.xlu0 %104
  %vm106 = vcmask 392448
  %107 = vst.msk [vmem:[%s1] sm:$0xff] %vm106, %v105
  %s108 = scalar_lea.vmem %s0, 66
  %v109 = vld [vmem:[%s108] ss:$8 sm:$0xf]
  %110 = vrot.lane.b32.xlu0 %v109, 32
  %v111 = vpop.permute.xlu0 %110
  %vm112 = vcmask 392448
  %s113 = scalar_lea.vmem %s1, 8
  %114 = vst.msk [vmem:[%s113] sm:$0xf] %vm112, %v111
  %s115 = scalar_lea.vmem %s0, 1
  %v116 = vld [vmem:[%s115] ss:$8 sm:$0xf]
  %s117 = scalar_lea.vmem %s0, 1
  %v118 = vld [vmem:[%s117] ss:$8 sm:$0xf0]
  %vm119 = vcmask 1047556
  %v120 = vsel %vm119, %v118, %v116
  %121 = vrot.lane.b32.xlu0 %v120, 16
  %v122 = vpop.permute.xlu0 %121
  %vm123 = vcmask 261248
  %124 = vst.msk [vmem:[%s1] sm:$0xff] %vm123, %v122
  %s125 = scalar_lea.vmem %s0, 65
  %v126 = vld [vmem:[%s125] ss:$8 sm:$0xf]
  %127 = vrot.lane.b32.xlu0 %v126, 16
  %v128 = vpop.permute.xlu0 %127
  %vm129 = vcmask 261248
  %s130 = scalar_lea.vmem %s1, 8
  %131 = vst.msk [vmem:[%s130] sm:$0xf] %vm129, %v128

// kernel: yolo_loss_forward.3
$region0: #{yolo_loss_forward.3}
  #allocation0 [shape = 'u32[]', space=smem, size = 0x4, offset = 0x4, fixed_abs, tag = 'smem constant byte address 0x4 - core index']
  #allocation1 [shape = 'u32[144,128]{1,0:T(1,128)}', space=vmem, size = 0x12000, scoped, tag = 'internal scratch']
  %s0 = inlined_call_operand.vmem [shape: f32[24,512], index: 0, kind: input, shape index: {}]
  %s1 = inlined_call_operand.vmem [shape: f32[3,8,128], index: 1, kind: output, shape index: {}]
  %s2 = sld [smem:[#allocation0]]
  $region37: #{yolo_loss_forward.3} parent=0
    _
  %s4 = ssub.s32 1, %s2
  %s5 = scalar_select 0, %s4, %s2
  loop: start=0, step=1, limit=5
  $region2: #{yolo_loss_forward.3} parent=0 // loop_pre_header
    _
  $region3: #{yolo_loss_forward.3} parent=0 // loop_header
    %s7 = sphi 0, %s11
    %p8 = scmp.ge.s32.totalorder %s7, 5
    %s17 = sphi 0, %s19
    %s20 = sphi 0, %s17
    %s21 = sphi 0, %s20
    %s37 = sphi 0, %s21
    %s43 = sphi 0, %s45
    %s46 = sphi 0, %s43
    %s47 = sphi 0, %s46
    %s63 = sphi 0, %s47
  $region4: #{yolo_loss_forward.3} parent=0 // loop_header_branch
    %10 = sbr.rel (%p8) target = $region8
  $region5: #{yolo_loss_forward.3} parent=0 // loop_body
    %s12 = ssub.s32 %s7, 1
    %s13 = ssub.s32 %s7, 2
    %s14 = sadd.s32 %s7, 1
    %s15 = ssub.s32 %s7, %s14
    %p16 = scmp.eq.s32.totalorder %s15, 0
    %s18 = sadd.s32 %s17, 1
    %s19 = scalar_select %p16, %s17, %s18
    %p22 = pneg %p16
    %p23 = scmp.eq.s32.totalorder %s7, 2
    %p24 = por %p22, %p23
    %p25 = scmp.ne.s32.totalorder %s17, %s20
    %p26 = scmp.eq.s32.totalorder %s7, 0
    %p27 = por %p25, %p26
    %p28 = scmp.ne.s32.totalorder %s17, %s20
    %p29 = scmp.eq.s32.totalorder %s12, 2
    %p30 = por %p28, %p29
    %p31 = scmp.ne.s32.totalorder %s20, %s21
    %p32 = scmp.eq.s32.totalorder %s12, 0
    %p33 = por %p31, %p32
    %p34 = scmp.ne.s32.totalorder %s20, %s21
    %p35 = scmp.eq.s32.totalorder %s13, 2
    %p36 = por %p34, %p35
    %p38 = scmp.ne.s32.totalorder %s21, %s37
    %p39 = scmp.eq.s32.totalorder %s13, 0
    %p40 = por %p38, %p39
    %s41 = ssub.s32 %s7, %s14
    %p42 = scmp.eq.s32.totalorder %s41, 0
    %s44 = sadd.s32 %s43, 1
    %s45 = scalar_select %p42, %s43, %s44
    %p48 = pneg %p42
    %p49 = scmp.eq.s32.totalorder %s7, 2
    %p50 = por %p48, %p49
    %p51 = scmp.ne.s32.totalorder %s43, %s46
    %p52 = scmp.eq.s32.totalorder %s7, 0
    %p53 = por %p51, %p52
    %p54 = scmp.ne.s32.totalorder %s43, %s46
    %p55 = scmp.eq.s32.totalorder %s12, 2
    %p56 = por %p54, %p55
    %p57 = scmp.ne.s32.totalorder %s46, %s47
    %p58 = scmp.eq.s32.totalorder %s12, 0
    %p59 = por %p57, %p58
    %p60 = scmp.ne.s32.totalorder %s46, %s47
    %p61 = scmp.eq.s32.totalorder %s13, 2
    %p62 = por %p60, %p61
    %p64 = scmp.ne.s32.totalorder %s47, %s63
    %p65 = scmp.eq.s32.totalorder %s13, 0
    %p66 = por %p64, %p65
    %p67 = scmp.le.s32.totalorder 1, %s7
    %p68 = scmp.lt.s32.totalorder %s7, 4
    %p69 = pnand %p67, %p68
    %p70 = pneg %p69
    // Predicated region
    $region9: #{yolo_loss_forward.3} parent=5 // pred_check
      _
    $region10: #{yolo_loss_forward.3} parent=5 // pred_check_branch
      %72 = sbr.rel (%p69) target = $region12
    $region11: #{yolo_loss_forward.3} parent=5 // pred_region
      %s73 = ssub.s32 %s7, 1
    $region12: #{yolo_loss_forward.3} parent=5 // pred_fallthru
      _
    %p74 = scmp.lt.s32.totalorder %s7, 3
    // Predicated region
    $region13: #{yolo_loss_forward.3} parent=5 // pred_check
      %p75 = pneg %p74
    $region14: #{yolo_loss_forward.3} parent=5 // pred_check_branch
      %77 = sbr.rel (%p75) target = $region16
    $region15: #{yolo_loss_forward.3} parent=5 // pred_region
      // Predicated region
      $region17: #{yolo_loss_forward.3} parent=15 // pred_check
        %p78 = pneg %p27
      $region18: #{yolo_loss_forward.3} parent=15 // pred_check_branch
        %80 = sbr.rel (%p78) target = $region20
      $region19: #{yolo_loss_forward.3} parent=15 // pred_region
        %p81 = scmp.lt.s32.totalorder %s7, 2
        %s82 = scalar_select %p81, %s7, 2
        %s83 = smul.addr %s82, 4
        %s84 = smul.addr %s83, 8
        %s85 = scalar_lea.vmem %s0, %s84
      $region20: #{yolo_loss_forward.3} parent=15 // pred_fallthru
        _
    $region16: #{yolo_loss_forward.3} parent=5 // pred_fallthru
      _
    %p86 = scmp.le.s32.totalorder 1, %s7
    %p87 = scmp.lt.s32.totalorder %s7, 4
    %p88 = pnand %p86, %p87
    %p89 = pneg %p88
    // Predicated region
    $region21: #{yolo_loss_forward.3} parent=5 // pred_check
      _
    $region22: #{yolo_loss_forward.3} parent=5 // pred_check_branch
      %91 = sbr.rel (%p88) target = $region24
    $region23: #{yolo_loss_forward.3} parent=5 // pred_region
      %s92 = ssub.s32 %s7, 1
      %p93 = scmp.lt.s32.totalorder %s12, 2
      %s94 = scalar_select %p93, %s12, 2
      %s95 = smul.addr %s94, 4
      %s96 = smul.addr %s95, 8
      %s97 = scalar_lea.vmem %s0, %s96
      %p98 = pneg %p33
      %p99 = pneg %p30
      %p100 = pneg %p59
      %p101 = pneg %p56
      %p102 = scmp.lt.s32.totalorder %s12, 2
      %s103 = scalar_select %p102, %s12, 2
      %s104 = smul.addr %s103, 8
      %s105 = scalar_lea.vmem %s1, %s104
      %p106 = scmp.lt.s32.totalorder %s12, 2
      %s107 = scalar_select %p106, %s12, 2
      %s108 = smul.addr %s107, 4
      %s109 = smul.addr %s108, 8
      %s110 = scalar_lea.vmem %s0, %s109
      %p111 = scmp.lt.s32.totalorder %s12, 2
      %s112 = scalar_select %p111, %s12, 2
      %s113 = smul.addr %s112, 8
      %s114 = scalar_lea.vmem %s1, %s113
      %v115 = vld [vmem:[%s110] sm:$0xff]
      %v116 = vld [vmem:[%s110 + $0x8] sm:$0xff]
      %v117 = vld [vmem:[%s110 + $0x10] sm:$0xff]
      %v118 = vld [vmem:[%s110 + $0x18] sm:$0xff]
      %v119 = vmax.f32 %v115, 0.0
      %v120 = vmax.f32 %v116, 0.0
      %v121 = vmax.f32 %v117, 0.0
      %v122 = vmax.f32 %v118, 0.0
      %v123 = vand.u32 2147483647, %v115
      %v124 = vand.u32 2147483647, %v116
      %v125 = vand.u32 2147483647, %v117
      %v126 = vand.u32 2147483647, %v118
      %v127 = vsub.f32 0.0, %v123
      %v128 = vsub.f32 0.0, %v124
      %v129 = vsub.f32 0.0, %v125
      %v130 = vsub.f32 0.0, %v126
      %v131 = vmul.f32 %v127, 1.442695
      %v132 = vpow.pop %v131
      %v133 = vmul.f32 %v128, 1.442695
      %v134 = vpow.pop %v133
      %v135 = vmul.f32 %v129, 1.442695
      %v136 = vpow.pop %v135
      %v137 = vmul.f32 %v130, 1.442695
      %v138 = vpow.pop %v137
      %v139 = vadd.f32 %v132, 1.0
      %v140 = vlog2.pop %v139
      %v141 = vmul.f32 %v140, 0.6931472
      %v142 = vmul.f32 -0.5, %v132
      %v143 = vadd.f32 %v142, 1.0
      %v144 = vmul.f32 %v143, %v132
      %v145 = vand.u32 2147483647, %v132
      %vm146 = vcmp.lt.f32.partialorder %v145, 0.0004427343
      %v147 = vsel %vm146, %v144, %v141
      %v148 = vadd.f32 %v134, 1.0
      %v149 = vlog2.pop %v148
      %v150 = vmul.f32 %v149, 0.6931472
      %v151 = vmul.f32 -0.5, %v134
      %v152 = vadd.f32 %v151, 1.0
      %v153 = vmul.f32 %v152, %v134
      %v154 = vand.u32 2147483647, %v134
      %vm155 = vcmp.lt.f32.partialorder %v154, 0.0004427343
      %v156 = vsel %vm155, %v153, %v150
      %v157 = vadd.f32 %v136, 1.0
      %v158 = vlog2.pop %v157
      %v159 = vmul.f32 %v158, 0.6931472
      %v160 = vmul.f32 -0.5, %v136
      %v161 = vadd.f32 %v160, 1.0
      %v162 = vmul.f32 %v161, %v136
      %v163 = vand.u32 2147483647, %v136
      %vm164 = vcmp.lt.f32.partialorder %v163, 0.0004427343
      %v165 = vsel %vm164, %v162, %v159
      %v166 = vadd.f32 %v138, 1.0
      %v167 = vlog2.pop %v166
      %v168 = vmul.f32 %v167, 0.6931472
      %v169 = vmul.f32 -0.5, %v138
      %v170 = vadd.f32 %v169, 1.0
      %v171 = vmul.f32 %v170, %v138
      %v172 = vand.u32 2147483647, %v138
      %vm173 = vcmp.lt.f32.partialorder %v172, 0.0004427343
      %v174 = vsel %vm173, %v171, %v168
      %v175 = vadd.f32 %v119, %v147
      %v176 = vadd.f32 %v120, %v156
      %v177 = vadd.f32 %v121, %v165
      %v178 = vadd.f32 %v122, %v174
      %v179 = vadd.f32 %v175, %v176
      %v180 = vadd.f32 %v179, %v177
      %v181 = vadd.f32 %v180, %v178
      %182 = vadd.xlane.f32.xlu0 %v181
      %v183 = vpop.xlane.xlu0 %182
      %v184 = vrot.slane %v183, 4
      %v185 = vadd.f32 %v183, %v184
      %v186 = vrot.slane %v185, 2
      %v187 = vadd.f32 %v185, %v186
      %v188 = vrot.slane %v187, 1
      %v189 = vadd.f32 %v187, %v188
      %s190 = vtos %v189
      %v191 = vstv %s190
      %v192 = vadd.f32 %v191, 0.0
      %193 = vst [vmem:[%s114] sm:$0xff] %v192
      %p194 = scmp.lt.s32.totalorder %s12, 2
      %s195 = scalar_select %p194, %s12, 2
      %s196 = smul.addr %s195, 8
      %s197 = scalar_lea.vmem %s1, %s196
      // Predicated region
      $region25: #{yolo_loss_forward.3} parent=23 // pred_check
        %p198 = pneg %p56
      $region26: #{yolo_loss_forward.3} parent=23 // pred_check_branch
        %200 = sbr.rel (%p198) target = $region28
      $region27: #{yolo_loss_forward.3} parent=23 // pred_region
        _
      $region28: #{yolo_loss_forward.3} parent=23 // pred_fallthru
        _
    $region24: #{yolo_loss_forward.3} parent=5 // pred_fallthru
      _
    %p201 = scmp.le.s32.totalorder 2, %s7
    // Predicated region
    $region29: #{yolo_loss_forward.3} parent=5 // pred_check
      %p202 = pneg %p201
    $region30: #{yolo_loss_forward.3} parent=5 // pred_check_branch
      %204 = sbr.rel (%p202) target = $region32
    $region31: #{yolo_loss_forward.3} parent=5 // pred_region
      %s205 = ssub.s32 %s7, 2
      // Predicated region
      $region33: #{yolo_loss_forward.3} parent=31 // pred_check
        %p206 = pneg %p62
      $region34: #{yolo_loss_forward.3} parent=31 // pred_check_branch
        %208 = sbr.rel (%p206) target = $region36
      $region35: #{yolo_loss_forward.3} parent=31 // pred_region
        %p209 = scmp.lt.s32.totalorder %s13, 2
        %s210 = scalar_select %p209, %s13, 2
        %s211 = smul.addr %s210, 8
        %s212 = scalar_lea.vmem %s1, %s211
      $region36: #{yolo_loss_forward.3} parent=31 // pred_fallthru
        _
    $region32: #{yolo_loss_forward.3} parent=5 // pred_fallthru
      _
  $region6: #{yolo_loss_forward.3} parent=0 // loop_footer
    %s11 = sadd.s32 1, %s7
  $region7: #{yolo_loss_forward.3} parent=0 // loop_footer_branch
    %6 = sbr.rel target = $region3
  $region8: #{yolo_loss_forward.3} parent=0 // loop_exit
    _

// kernel: yolo_loss_forward.2
$region0: #{yolo_loss_forward.2}
  #allocation0 [shape = 'u32[]', space=smem, size = 0x4, offset = 0x4, fixed_abs, tag = 'smem constant byte address 0x4 - core index']
  #allocation1 [shape = 'u32[144,128]{1,0:T(1,128)}', space=vmem, size = 0x12000, scoped, tag = 'internal scratch']
  %s0 = inlined_call_operand.vmem [shape: f32[3,9,128], index: 0, kind: input, shape index: {}]
  %s1 = inlined_call_operand.vmem [shape: f32[3,9,128], index: 1, kind: input, shape index: {}]
  %s2 = inlined_call_operand.vmem [shape: f32[3,4], index: 2, kind: output, shape index: {}]
  %s3 = sld [smem:[#allocation0]]
  $region41: #{yolo_loss_forward.2} parent=0
    _
  %s5 = ssub.s32 1, %s3
  %s6 = scalar_select 0, %s5, %s3
  $region1: #{yolo_loss_forward.2} parent=0
    #allocation2 [shape = 'u8[2048]{0}', space=smem, size = 0x800, scoped, tag = 'output window, operand 0, single buffered']
    #allocation3 [shape = 's32[2]{0}', space=sflag, size = 0x8, scoped, tag = 'scoped memory for yolo_loss_forward.2']
    %7 = vsyncpa [#allocation3], 0
    loop: start=0, step=1, limit=5
    $region2: #{yolo_loss_forward.2} parent=1 // loop_pre_header
      _
    $region3: #{yolo_loss_forward.2} parent=1 // loop_header
      %s9 = sphi 0, %s13
      %p10 = scmp.ge.s32.totalorder %s9, 5
      %s19 = sphi 0, %s21
      %s22 = sphi 0, %s19
      %s23 = sphi 0, %s22
      %s39 = sphi 0, %s23
      %s45 = sphi 0, %s47
      %s48 = sphi 0, %s45
      %s49 = sphi 0, %s48
      %s65 = sphi 0, %s49
      %s69 = sphi 0, %s69
      %s71 = sphi 0, %s69
      %s72 = sphi 0, %s71
      %s86 = sphi 0, %s72
    $region4: #{yolo_loss_forward.2} parent=1 // loop_header_branch
      %12 = sbr.rel (%p10) target = $region8
    $region5: #{yolo_loss_forward.2} parent=1 // loop_body
      %s14 = ssub.s32 %s9, 1
      %s15 = ssub.s32 %s9, 2
      %s16 = sadd.s32 %s9, 1
      %s17 = ssub.s32 %s9, %s16
      %p18 = scmp.eq.s32.totalorder %s17, 0
      %s20 = sadd.s32 %s19, 1
      %s21 = scalar_select %p18, %s19, %s20
      %p24 = pneg %p18
      %p25 = scmp.eq.s32.totalorder %s9, 2
      %p26 = por %p24, %p25
      %p27 = scmp.ne.s32.totalorder %s19, %s22
      %p28 = scmp.eq.s32.totalorder %s9, 0
      %p29 = por %p27, %p28
      %p30 = scmp.ne.s32.totalorder %s19, %s22
      %p31 = scmp.eq.s32.totalorder %s14, 2
      %p32 = por %p30, %p31
      %p33 = scmp.ne.s32.totalorder %s22, %s23
      %p34 = scmp.eq.s32.totalorder %s14, 0
      %p35 = por %p33, %p34
      %p36 = scmp.ne.s32.totalorder %s22, %s23
      %p37 = scmp.eq.s32.totalorder %s15, 2
      %p38 = por %p36, %p37
      %p40 = scmp.ne.s32.totalorder %s23, %s39
      %p41 = scmp.eq.s32.totalorder %s15, 0
      %p42 = por %p40, %p41
      %s43 = ssub.s32 %s9, %s16
      %p44 = scmp.eq.s32.totalorder %s43, 0
      %s46 = sadd.s32 %s45, 1
      %s47 = scalar_select %p44, %s45, %s46
      %p50 = pneg %p44
      %p51 = scmp.eq.s32.totalorder %s9, 2
      %p52 = por %p50, %p51
      %p53 = scmp.ne.s32.totalorder %s45, %s48
      %p54 = scmp.eq.s32.totalorder %s9, 0
      %p55 = por %p53, %p54
      %p56 = scmp.ne.s32.totalorder %s45, %s48
      %p57 = scmp.eq.s32.totalorder %s14, 2
      %p58 = por %p56, %p57
      %p59 = scmp.ne.s32.totalorder %s48, %s49
      %p60 = scmp.eq.s32.totalorder %s14, 0
      %p61 = por %p59, %p60
      %p62 = scmp.ne.s32.totalorder %s48, %s49
      %p63 = scmp.eq.s32.totalorder %s15, 2
      %p64 = por %p62, %p63
      %p66 = scmp.ne.s32.totalorder %s49, %s65
      %p67 = scmp.eq.s32.totalorder %s15, 0
      %p68 = por %p66, %p67
      %s70 = sadd.s32 %s69, 1
      %p73 = scmp.eq.s32.totalorder %s9, 2
      %p74 = scmp.ne.s32.totalorder %s69, %s71
      %p75 = scmp.eq.s32.totalorder %s9, 0
      %p76 = por %p74, %p75
      %p77 = scmp.ne.s32.totalorder %s69, %s71
      %p78 = scmp.eq.s32.totalorder %s14, 2
      %p79 = por %p77, %p78
      %p80 = scmp.ne.s32.totalorder %s71, %s72
      %p81 = scmp.eq.s32.totalorder %s14, 0
      %p82 = por %p80, %p81
      %p83 = scmp.ne.s32.totalorder %s71, %s72
      %p84 = scmp.eq.s32.totalorder %s15, 2
      %p85 = por %p83, %p84
      %p87 = scmp.ne.s32.totalorder %s72, %s86
      %p88 = scmp.eq.s32.totalorder %s15, 0
      %p89 = por %p87, %p88
      %p90 = scmp.le.s32.totalorder 1, %s9
      %p91 = scmp.lt.s32.totalorder %s9, 4
      %p92 = pnand %p90, %p91
      %p93 = pneg %p92
      // Predicated region
      $region9: #{yolo_loss_forward.2} parent=5 // pred_check
        _
      $region10: #{yolo_loss_forward.2} parent=5 // pred_check_branch
        %95 = sbr.rel (%p92) target = $region12
      $region11: #{yolo_loss_forward.2} parent=5 // pred_region
        %s96 = ssub.s32 %s9, 1
      $region12: #{yolo_loss_forward.2} parent=5 // pred_fallthru
        _
      %p97 = scmp.lt.s32.totalorder %s9, 3
      // Predicated region
      $region13: #{yolo_loss_forward.2} parent=5 // pred_check
        %p98 = pneg %p97
      $region14: #{yolo_loss_forward.2} parent=5 // pred_check_branch
        %100 = sbr.rel (%p98) target = $region16
      $region15: #{yolo_loss_forward.2} parent=5 // pred_region
        // Predicated region
        $region17: #{yolo_loss_forward.2} parent=15 // pred_check
          %p101 = pneg %p29
        $region18: #{yolo_loss_forward.2} parent=15 // pred_check_branch
          %103 = sbr.rel (%p101) target = $region20
        $region19: #{yolo_loss_forward.2} parent=15 // pred_region
          %p104 = scmp.lt.s32.totalorder %s9, 2
          %s105 = scalar_select %p104, %s9, 2
          %s106 = smul.addr %s105, 2
          %s107 = smul.addr %s106, 8
          %s108 = scalar_lea.vmem %s0, %s107
        $region20: #{yolo_loss_forward.2} parent=15 // pred_fallthru
          _
        // Predicated region
        $region21: #{yolo_loss_forward.2} parent=15 // pred_check
          %p109 = pneg %p55
        $region22: #{yolo_loss_forward.2} parent=15 // pred_check_branch
          %111 = sbr.rel (%p109) target = $region24
        $region23: #{yolo_loss_forward.2} parent=15 // pred_region
          %p112 = scmp.lt.s32.totalorder %s9, 2
          %s113 = scalar_select %p112, %s9, 2
          %s114 = smul.addr %s113, 2
          %s115 = smul.addr %s114, 8
          %s116 = scalar_lea.vmem %s1, %s115
        $region24: #{yolo_loss_forward.2} parent=15 // pred_fallthru
          _
      $region16: #{yolo_loss_forward.2} parent=5 // pred_fallthru
        _
      %p117 = scmp.le.s32.totalorder 1, %s9
      %p118 = scmp.lt.s32.totalorder %s9, 4
      %p119 = pnand %p117, %p118
      %p120 = pneg %p119
      // Predicated region
      $region25: #{yolo_loss_forward.2} parent=5 // pred_check
        _
      $region26: #{yolo_loss_forward.2} parent=5 // pred_check_branch
        %122 = sbr.rel (%p119) target = $region28
      $region27: #{yolo_loss_forward.2} parent=5 // pred_region
        %s123 = ssub.s32 %s9, 1
        %p124 = scmp.lt.s32.totalorder %s14, 2
        %s125 = scalar_select %p124, %s14, 2
        %s126 = smul.addr %s125, 2
        %s127 = smul.addr %s126, 8
        %s128 = scalar_lea.vmem %s0, %s127
        %p129 = pneg %p35
        %p130 = pneg %p32
        %p131 = scmp.lt.s32.totalorder %s14, 2
        %s132 = scalar_select %p131, %s14, 2
        %s133 = smul.addr %s132, 2
        %s134 = smul.addr %s133, 8
        %s135 = scalar_lea.vmem %s1, %s134
        %p136 = pneg %p61
        %p137 = pneg %p58
        %p138 = pneg %p82
        %p139 = pneg %p79
        %p140 = scmp.lt.s32.totalorder %s14, 2
        %s141 = scalar_select %p140, %s14, 2
        %s142 = smul.addr %s141, 2
        %s143 = smul.addr %s142, 8
        %s144 = scalar_lea.vmem %s0, %s143
        %p145 = scmp.lt.s32.totalorder %s14, 2
        %s146 = scalar_select %p145, %s14, 2
        %s147 = smul.addr %s146, 2
        %s148 = smul.addr %s147, 8
        %s149 = scalar_lea.vmem %s1, %s148
        %v150 = vld [vmem:[%s144] sm:$0xff]
        %v151 = vld [vmem:[%s144 + $0x8] sm:$0x1]
        %v152 = vld [vmem:[%s149] sm:$0xff]
        %v153 = vld [vmem:[%s149 + $0x8] sm:$0x1]
        %v154 = vxor.u32 %v150, 2147483648
        %v155 = vmul.f32 %v154, 1.442695
        %v156 = vpow.pop %v155
        %v157 = vadd.f32 %v156, 1.0
        %v158 = vrcp.pop %v157
        %v159 = vmul.f32 1.0, %v158
        %v160 = vmul.f32 %v159, 2.0
        %v161 = vsub.f32 %v160, 0.5
        %v162 = vmul.f32 %v160, %v160
        %v164 = vrot.slane %v152, 6
        %v166 = vmul.f32 %v162, %v164
        %v167 = vmul.f32 %v166, 0.5
        %v169 = vrot.slane %v167, 2
        %v171 = vsub.f32 %v161, %v169
        %v172 = vadd.f32 %v161, %v169
        %v173 = vmul.f32 %v152, 0.5
        %v175 = vrot.slane %v173, 2
        %v177 = vsub.f32 %v152, %v175
        %v178 = vadd.f32 %v152, %v175
        %v180 = vrot.slane %v178, 2
        %v182 = vmin.f32 %v172, %v180
        %v184 = vrot.slane %v177, 2
        %v186 = vmax.f32 %v171, %v184
        %v187 = vsub.f32 %v182, %v186
        %v188 = vmax.f32 %v187, 0.0
        %v190 = vrot.slane %v188, 1
        %v192 = vmul.f32 %v188, %v190
        %v193 = vsub.f32 %v172, %v171
        %v195 = vrot.slane %v193, 1
        %v197 = vmul.f32 %v193, %v195
        %v198 = vsub.f32 %v178, %v177
        %v200 = vrot.slane %v198, 1
        %v202 = vmul.f32 %v198, %v200
        %v204 = vrot.slane %v202, 2
        %v206 = vadd.f32 %v197, %v204
        %v207 = vsub.f32 %v206, %v192
        %v208 = vrcp.pop %v207
        %v209 = vmul.f32 %v192, %v208
        %v210 = vmax.f32 %v172, %v180
        %v211 = vmin.f32 %v171, %v184
        %v212 = vsub.f32 %v210, %v211
        %v213 = vadd.f32 %v212, 1e-16
        %v215 = vrot.slane %v212, 1
        %v217 = vmul.f32 %v213, %v215
        %v218 = vadd.f32 %v217, 1e-16
        %v219 = vsub.f32 %v218, %v207
        %v220 = vrcp.pop %v218
        %v221 = vmul.f32 %v219, %v220
        %v222 = vsub.f32 %v209, %v221
        %vm223 = vcmp.gt.f32.partialorder %v152, 0.0
        %v224 = vsub.f32 1.0, %v222
        %v226 = vrot.slane %v224, 1
        %v228 = vsel %vm223, %v226, 0.0
        %v230 = vrot.slane %v228, 7
        %vm232 = vcmask 1040384
        %v233 = vsel %vm232, %v230, 0.0
        %234 = vadd.xlane.f32.xlu0 %v233
        %v235 = vpop.xlane.xlu0 %234
        %v236 = vrot.slane %v235, 4
        %v237 = vadd.f32 %v235, %v236
        %v238 = vrot.slane %v237, 2
        %v239 = vadd.f32 %v237, %v238
        %v240 = vrot.slane %v239, 1
        %v241 = vadd.f32 %v239, %v240
        %s242 = vtos %v241
        %v243 = vrot.slane %v152, 7
        %v245 = vsel %vm232, %v243, 0.0
        %246 = vadd.xlane.f32.xlu0 %v245
        %v247 = vpop.xlane.xlu0 %246
        %v248 = vrot.slane %v247, 4
        %v249 = vadd.f32 %v247, %v248
        %v250 = vrot.slane %v249, 2
        %v251 = vadd.f32 %v249, %v250
        %v252 = vrot.slane %v251, 1
        %v253 = vadd.f32 %v251, %v252
        %s254 = vtos %v253
        %vm255 = vcmp.gt.f32.partialorder %v153, 0.0
        %v256 = vmax.f32 %v222, 0.0
        %v258 = vrot.slane %v256, 4
        %v260 = vmul.f32 %v150, %v258
        %v262 = vrot.slane %v260, 4
        %v264 = vsel %vm255, %v262, 0.0
        %v265 = vsel %vm232, %v264, 0.0
        %266 = vadd.xlane.f32.xlu0 %v265
        %v267 = vpop.xlane.xlu0 %266
        %v268 = vrot.slane %v267, 4
        %v269 = vadd.f32 %v267, %v268
        %v270 = vrot.slane %v269, 2
        %v271 = vadd.f32 %v269, %v270
        %v272 = vrot.slane %v271, 1
        %v273 = vadd.f32 %v271, %v272
        %s274 = vtos %v273
        %v275 = vlaneseq
        %v276 = vshrl.u32 %v275, 7
        %v277 = vcvt.f32.s32.to.zero.pseudo %v152
        %v278 = vlaneseq
        %v279 = vshrl.u32 %v278, 7
        %v280 = vsub.s32 6, %v279
        %v281 = vrot.slane %v277, %v280
        %vm282 = vcmp.eq.s32.totalorder %v276, %v281
        %v283 = vsel %vm282, 1, 0
        %v284 = vcvt.s32.f32 %v283
        %v285 = vmax.f32 %v150, 0.0
        %v286 = vmax.f32 %v151, 0.0
        %v288 = vrot.slane %v284, 3
        %v290 = vmul.f32 %v150, %v288
        %v291 = vmul.f32 %v151, %v288
        %v292 = vsub.f32 %v285, %v290
        %v293 = vsub.f32 %v286, %v291
        %v294 = vand.u32 2147483647, %v150
        %v295 = vand.u32 2147483647, %v151
        %v296 = vsub.f32 0.0, %v294
        %v297 = vsub.f32 0.0, %v295
        %v298 = vmul.f32 %v296, 1.442695
        %v299 = vpow.pop %v298
        %v300 = vmul.f32 %v297, 1.442695
        %v301 = vpow.pop %v300
        %v302 = vadd.f32 %v299, 1.0
        %v303 = vlog2.pop %v302
        %v304 = vmul.f32 %v303, 0.6931472
        %v305 = vmul.f32 -0.5, %v299
        %v306 = vadd.f32 %v305, 1.0
        %v307 = vmul.f32 %v306, %v299
        %v308 = vand.u32 2147483647, %v299
        %vm309 = vcmp.lt.f32.partialorder %v308, 0.0004427343
        %v310 = vsel %vm309, %v307, %v304
        %v311 = vadd.f32 %v301, 1.0
        %v312 = vlog2.pop %v311
        %v313 = vmul.f32 %v312, 0.6931472
        %v314 = vmul.f32 -0.5, %v301
        %v315 = vadd.f32 %v314, 1.0
        %v316 = vmul.f32 %v315, %v301
        %v317 = vand.u32 2147483647, %v301
        %vm318 = vcmp.lt.f32.partialorder %v317, 0.0004427343
        %v319 = vsel %vm318, %v316, %v313
        %v320 = vadd.f32 %v292, %v310
        %v321 = vadd.f32 %v293, %v319
        %v322 = vsel %vm223, 1, 0
        %v323 = vlaneseq
        %v324 = vshrl.u32 %v323, 7
        %v325 = vsub.s32 7, %v324
        %v326 = vrot.slane %v322, %v325
        %vm327 = vcmp.eq.s32.totalorder %v326, 1
        %v328 = vsel %vm327, %v320, 0.0
        %v329 = vsel %vm327, %v321, 0.0
        %vm332 = vcmask 1042432
        %v333 = vrot.slane %v328, 5
        %v334 = vrot.slane %v329, 5
        %v335 = vsel %vm332, %v333, %v334
        %vm337 = vcmask 1043456
        %v338 = vsel %vm337, %v335, 0.0
        %339 = vadd.xlane.f32.xlu0 %v338
        %v340 = vpop.xlane.xlu0 %339
        %v341 = vrot.slane %v340, 4
        %v342 = vadd.f32 %v340, %v341
        %v343 = vrot.slane %v342, 2
        %v344 = vadd.f32 %v342, %v343
        %v345 = vrot.slane %v344, 1
        %v346 = vadd.f32 %v344, %v345
        %s347 = vtos %v346
        %s348 = smul.u32 %s14, 128
        %s349 = scalar_lea.smem [#allocation2], %s348
        %350 = sst [smem:[%s349]] %s242
        %s351 = sadd.s32 %s348, 1
        %s352 = scalar_lea.smem [#allocation2], %s351
        %353 = sst [smem:[%s352]] %s347
        %s354 = sadd.s32 %s348, 2
        %s355 = scalar_lea.smem [#allocation2], %s354
        %356 = sst [smem:[%s355]] %s254
        %s357 = sadd.s32 %s348, 3
        %s358 = scalar_lea.smem [#allocation2], %s357
        %359 = sst [smem:[%s358]] %s274
        // Predicated region
        $region29: #{yolo_loss_forward.2} parent=27 // pred_check
          %p360 = pneg %p79
        $region30: #{yolo_loss_forward.2} parent=27 // pred_check_branch
          %362 = sbr.rel (%p360) target = $region32
        $region31: #{yolo_loss_forward.2} parent=27 // pred_region
          %s364 = ssub.s32 64, 64
          %365 = vsyncadd [#allocation3], %s364
          %s367 = sshll.u32 %s2, 4
          %s368 = int_to_ptr.vmem [resolvable:$true] %s367
          %370 = dma.smem_to_vmem [#allocation2], 64, %s368, [#allocation3]
        $region32: #{yolo_loss_forward.2} parent=27 // pred_fallthru
          _
        // Predicated region
        $region33: #{yolo_loss_forward.2} parent=27 // pred_check
          %p371 = pneg %p79
        $region34: #{yolo_loss_forward.2} parent=27 // pred_check_branch
          %373 = sbr.rel (%p371) target = $region36
        $region35: #{yolo_loss_forward.2} parent=27 // pred_region
          %374 = dma.done [#allocation3], 64
        $region36: #{yolo_loss_forward.2} parent=27 // pred_fallthru
          _
        %375 = sfence
      $region28: #{yolo_loss_forward.2} parent=5 // pred_fallthru
        _
      %p376 = scmp.le.s32.totalorder 2, %s9
      // Predicated region
      $region37: #{yolo_loss_forward.2} parent=5 // pred_check
        %p377 = pneg %p376
      $region38: #{yolo_loss_forward.2} parent=5 // pred_check_branch
        %379 = sbr.rel (%p377) target = $region40
      $region39: #{yolo_loss_forward.2} parent=5 // pred_region
        %s380 = ssub.s32 %s9, 2
      $region40: #{yolo_loss_forward.2} parent=5 // pred_fallthru
        _
    $region6: #{yolo_loss_forward.2} parent=1 // loop_footer
      %s13 = sadd.s32 1, %s9
    $region7: #{yolo_loss_forward.2} parent=1 // loop_footer_branch
      %8 = sbr.rel target = $region3
    $region8: #{yolo_loss_forward.2} parent=1 // loop_exit
      _
    %381 = vsyncpa [#allocation3], 1
    %s382 = scalar_lea.sflag [#allocation3], 1
    %383 = vsyncpa %s382, 1

</llo_original>
